<compile_context>
chip_gen: v5e
topology: v5e:2x2
jax: 0.10.0
libtpu: 0.0.40
codegen_flags: <defaults>
</compile_context>

<pallas_src>
import numpy as np
import jax
import jax.numpy as jnp
from jax import lax
from jax.experimental import pallas as pl
from jax.experimental.pallas import tpu as pltpu

CONV1_CH = 128   # conv1 output channels
CONV2_CH = 64    # conv2 output channels == LSTM sequence length


# ----------------------------------------------------------------------------
# Fused forward kernel (one grid step == one block of NB batch elements)
# ----------------------------------------------------------------------------

def _make_fused_kernel(W, hidden_dim, layer_dim, nb):
    W1 = W - 2          # conv1 output width (valid, k=3)
    W2 = W - 4          # conv2 output width (k=5, pad=1) == LSTM input_dim
    T = CONV2_CH        # LSTM sequence length (= conv2 channels)
    H = hidden_dim
    L = layer_dim
    NB = nb             # batch elements per grid step (static)

    def kernel(*refs):
        x_ref = refs[0]
        w1f_ref, b1f_ref, w2f_ref, b2f_ref = refs[1:5]
        lstm_refs = refs[5:5 + 3 * L]
        fc1_wt_ref, fc1_b_ref, fc2_wt_ref, fc2_b_ref = refs[5 + 3 * L:9 + 3 * L]
        alphas_ref = refs[9 + 3 * L]          # (4,) f32 in SMEM
        o_ref = refs[10 + 3 * L]              # (NB, out_dim)
        a1p_sc = refs[11 + 3 * L]             # (128, W1+2) VMEM scratch
        xp_sc = refs[12 + 3 * L]              # (NB*T, 4H)  VMEM scratch

        a_c1 = alphas_ref[0]
        a_c2 = alphas_ref[1]
        a_f1 = alphas_ref[2]
        a_f2 = alphas_ref[3]

        def prelu(v, a):
            return jnp.where(v > 0, v, a * v)

        # Hoist all weight loads / bias broadcasts out of the per-element loop
        # and out of the time loop.
        w1k = [w1f_ref[k] for k in range(3)]                       # each (128, 1)
        b1 = b1f_ref[...]                                          # (128, 1)
        w2k = [w2f_ref[k] for k in range(5)]                       # each (64, 128)
        b2 = b2f_ref[...]                                          # (64, 1)
        wih = [lstm_refs[3 * l + 0][...] for l in range(L)]
        whh = [lstm_refs[3 * l + 1][...] for l in range(L)]
        bs = [lstm_refs[3 * l + 2][...] for l in range(L)]         # (1, 4H)
        bsb = [jnp.broadcast_to(b, (NB, 4 * H)) for b in bs]       # hoisted broadcast

        # conv2 has padding=(0, 1): zero the padded scratch once per grid step;
        # only the interior columns are rewritten per element below, so the pad
        # columns stay zero for all NB elements.
        a1p_sc[...] = jnp.zeros_like(a1p_sc)

        # ---------------- CNN stack per element (unrolled over NB) ----------------
        for n in range(NB):
            # conv1 (1 -> 128, k=3, valid) + folded BN + PReLU, channel-major:
            # a1t[c, w] = sum_k w1f[k, c] * x[w + k]   (pure VPU work, C_in = 1)
            x_row = x_ref[n]                                       # (1, W)
            acc1 = (w1k[0] * x_row[:, 0:W1]
                    + w1k[1] * x_row[:, 1:1 + W1]
                    + w1k[2] * x_row[:, 2:2 + W1]
                    + b1)                                          # (128, W1)
            a1p_sc[:, 1:W1 + 1] = prelu(acc1, a_c1)

            # conv2 (128 -> 64, k=5, pad 1) + folded BN + PReLU:
            # 5 shifted K=128 matmuls, channel-major output (T=64, W2)
            acc2 = jnp.dot(w2k[0], a1p_sc[:, 0:W2],
                           preferred_element_type=jnp.float32)
            for k in range(1, 5):
                acc2 = acc2 + jnp.dot(w2k[k], a1p_sc[:, k:k + W2],
                                      preferred_element_type=jnp.float32)
            a2t = prelu(acc2 + b2, a_c2)                           # (T, W2)

            # LSTM layer-0 input projection hoisted out of the recurrence:
            # (T, W2) @ (W2, 4H) once per element, stored contiguously.
            xp_sc[n * T:(n + 1) * T, :] = (
                jnp.dot(a2t, wih[0], preferred_element_type=jnp.float32)
                + bs[0])                                           # (T, 4H)

        # ---------------- batched stacked LSTM over the NB elements ----------------
        def cell(gates, c_prev):
            i = jax.nn.sigmoid(gates[:, 0 * H:1 * H])
            f = jax.nn.sigmoid(gates[:, 1 * H:2 * H])
            g = jnp.tanh(gates[:, 2 * H:3 * H])
            o = jax.nn.sigmoid(gates[:, 3 * H:4 * H])
            c = f * c_prev + i * g
            h = o * jnp.tanh(c)
            return h, c

        def step(t, carry):
            hs, cs = carry
            hs, cs = list(hs), list(cs)
            # gather the precomputed layer-0 input projection for all NB elements
            rows = [xp_sc[pl.ds(n * T + t, 1), :] for n in range(NB)]
            x_t = jnp.concatenate(rows, axis=0) if NB > 1 else rows[0]   # (NB, 4H)
            # layer 0: only the (NB, H) @ (H, 4H) recurrence matmul is on the path
            gates0 = x_t + jnp.dot(hs[0], whh[0],
                                   preferred_element_type=jnp.float32)
            hs[0], cs[0] = cell(gates0, cs[0])
            # layers 1..L-1 run inside the same time loop (no stored sequence)
            for l in range(1, L):
                gates = (jnp.dot(hs[l - 1], wih[l],
                                 preferred_element_type=jnp.float32)
                         + jnp.dot(hs[l], whh[l],
                                   preferred_element_type=jnp.float32)
                         + bsb[l])
                hs[l], cs[l] = cell(gates, cs[l])
            return tuple(hs), tuple(cs)

        zero = jnp.zeros((NB, H), jnp.float32)
        hs, _ = lax.fori_loop(0, T, step,
                              (tuple(zero for _ in range(L)),
                               tuple(zero for _ in range(L))))
        h_last = hs[L - 1]                                         # == r_out[:, -1, :]

        # ---------------- FC head ----------------
        f1 = prelu(jnp.dot(h_last, fc1_wt_ref[...],
                           preferred_element_type=jnp.float32) + fc1_b_ref[...],
                   a_f1)
        out = prelu(jnp.dot(f1, fc2_wt_ref[...],
                            preferred_element_type=jnp.float32) + fc2_b_ref[...],
                    a_f2)
        o_ref[...] = out                                           # (NB, output_dim)

    return kernel


def cldnn_forward(x, p, max_block=8):
    """x: (N, 1, 1, W) as in the PyTorch module; returns (N, output_dim)."""
    N = x.shape[0]
    W = x.shape[-1]
    H = p['hidden_dim']
    L = p['layer_dim']
    out_dim = p['fc2_b'].shape[-1]
    W1, W2 = W - 2, W - 4
    assert p['lstm0_wih_t'].shape[0] == W2, "LSTM input_dim must equal W - 4"

    # Batch block: up to 8 elements per grid step (fills the 8 vreg sublanes of the
    # batched LSTM state).  Pad N up to a multiple of NB and slice the result.
    NB = min(N, max_block)
    n_blocks = -(-N // NB)
    Npad = n_blocks * NB

    x3d = x.reshape(N, 1, W).astype(jnp.float32)
    if Npad != N:
        x3d = jnp.pad(x3d, ((0, Npad - N), (0, 0), (0, 0)))

    weights = [p['w1f'], p['b1f'], p['w2f'], p['b2f']]
    for l in range(L):
        weights += [p[f'lstm{l}_wih_t'], p[f'lstm{l}_whh_t'], p[f'lstm{l}_b']]
    weights += [p['fc1_wt'], p['fc1_b'], p['fc2_wt'], p['fc2_b']]

    def _const_spec(a):
        zeros = (0,) * a.ndim
        return pl.BlockSpec(a.shape, lambda b, _z=zeros: _z)

    in_specs = ([pl.BlockSpec((NB, 1, W), lambda b: (b, 0, 0))]
                + [_const_spec(a) for a in weights]
                + [pl.BlockSpec(memory_space=pltpu.MemorySpace.SMEM)])

    kernel = _make_fused_kernel(W, H, L, NB)
    out = pl.pallas_call(
        kernel,
        out_shape=jax.ShapeDtypeStruct((Npad, out_dim), jnp.float32),
        grid=(n_blocks,),
        in_specs=in_specs,
        out_specs=pl.BlockSpec((NB, out_dim), lambda b: (b, 0)),
        scratch_shapes=[pltpu.VMEM((CONV1_CH, W1 + 2), jnp.float32),
                        pltpu.VMEM((NB * CONV2_CH, 4 * H), jnp.float32)],
        compiler_params=pltpu.CompilerParams(
            dimension_semantics=("parallel",)),
    )(x3d, *weights, p['alphas'])
    return out[:N]


# ----------------------------------------------------------------------------
# Deterministic parameter init (synthetic; BN folded in eval mode)
# ----------------------------------------------------------------------------

def init_params(key, input_dim, hidden_dim, layer_dim, output_dim):
    eps = 1e-5
    keys = iter(jax.random.split(key, 64))

    def u(shape, scale):
        return jax.random.uniform(next(keys), shape, jnp.float32, -scale, scale)

    def nrm(shape, scale=0.1):
        return scale * jax.random.normal(next(keys), shape, jnp.float32)

    p = {'layer_dim': layer_dim, 'hidden_dim': hidden_dim}

    # conv1 (128, 1, 1, 3) + BatchNorm2d(128) folded (eval mode)
    w1 = u((CONV1_CH, 1, 1, 3), 1.0 / np.sqrt(3.0))
    g1 = 1.0 + nrm((CONV1_CH,))
    be1 = nrm((CONV1_CH,))
    m1 = nrm((CONV1_CH,))
    v1 = jnp.abs(jax.random.normal(next(keys), (CONV1_CH,), jnp.float32)) + 0.5
    s1 = g1 / jnp.sqrt(v1 + eps)
    w1f = w1.reshape(CONV1_CH, 3) * s1[:, None]                 # (128, 3)  [cout, k]
    p['w1f'] = jnp.transpose(w1f, (1, 0)).reshape(3, CONV1_CH, 1)  # (3, 128, 1)
    p['b1f'] = (be1 - m1 * s1).reshape(CONV1_CH, 1)             # (128, 1)

    # conv2 (64, 128, 1, 5) + BatchNorm2d(64) folded
    w2 = u((CONV2_CH, CONV1_CH, 1, 5), 1.0 / np.sqrt(CONV1_CH * 5.0))
    g2 = 1.0 + nrm((CONV2_CH,))
    be2 = nrm((CONV2_CH,))
    m2 = nrm((CONV2_CH,))
    v2 = jnp.abs(jax.random.normal(next(keys), (CONV2_CH,), jnp.float32)) + 0.5
    s2 = g2 / jnp.sqrt(v2 + eps)
    # w2f[k, cout, cin] = w2[cout, cin, 0, k] * s2[cout]
    p['w2f'] = jnp.transpose(w2[:, :, 0, :], (2, 0, 1)) * s2[None, :, None]
    p['b2f'] = (be2 - m2 * s2).reshape(CONV2_CH, 1)             # (64, 1)

    # LSTM layers (PyTorch gate order i, f, g, o)
    kscale = 1.0 / np.sqrt(hidden_dim)
    for l in range(layer_dim):
        d_in = input_dim if l == 0 else hidden_dim
        w_ih = u((4 * hidden_dim, d_in), kscale)
        w_hh = u((4 * hidden_dim, hidden_dim), kscale)
        b_ih = u((4 * hidden_dim,), kscale)
        b_hh = u((4 * hidden_dim,), kscale)
        p[f'lstm{l}_wih_t'] = w_ih.T                            # (d_in, 4H)
        p[f'lstm{l}_whh_t'] = w_hh.T                            # (H, 4H)
        p[f'lstm{l}_b'] = (b_ih + b_hh).reshape(1, 4 * hidden_dim)

    # FC head: Linear(H, 32) -> PReLU -> Linear(32, output_dim) -> PReLU
    w_fc1 = u((32, hidden_dim), 1.0 / np.sqrt(hidden_dim))
    b_fc1 = u((32,), 1.0 / np.sqrt(hidden_dim))
    w_fc2 = u((output_dim, 32), 1.0 / np.sqrt(32.0))
    b_fc2 = u((output_dim,), 1.0 / np.sqrt(32.0))
    p['fc1_wt'] = w_fc1.T
    p['fc1_b'] = b_fc1.reshape(1, 32)
    p['fc2_wt'] = w_fc2.T
    p['fc2_b'] = b_fc2.reshape(1, output_dim)

    # shared PReLU alphas: [cnn prelu1, cnn prelu2, fc prelu1, fc prelu2]
    p['alphas'] = jnp.full((4,), 0.25, jnp.float32)
    return p


# ----------------------------------------------------------------------------
# Pure-JAX reference (same math, different formulation) for correctness check
# ----------------------------------------------------------------------------

def reference_forward(x4d, p):
    hp = lax.Precision.HIGHEST
    N, _, _, W = x4d.shape
    W1, W2 = W - 2, W - 4
    H = p['hidden_dim']
    L = p['layer_dim']
    a_c1, a_c2, a_f1, a_f2 = [p['alphas'][i] for i in range(4)]
    prelu = lambda v, a: jnp.where(v > 0, v, a * v)

    x2d = x4d.reshape(N, W).astype(jnp.float32)

    # conv1 + BN(folded) + PReLU
    w1f2 = p['w1f'].reshape(3, CONV1_CH)                        # [k, cout]
    idx1 = jnp.arange(W1)[:, None] + jnp.arange(3)[None, :]
    p1 = x2d[:, idx1]                                           # (N, W1, 3)
    a1 = prelu(jnp.einsum('nwk,kc->nwc', p1, w1f2, precision=hp)
               + p['b1f'][:, 0], a_c1)                          # (N, W1, 128)

    # conv2 + BN(folded) + PReLU
    a1p = jnp.pad(a1, ((0, 0), (1, 1), (0, 0)))
    idx2 = jnp.arange(W2)[:, None] + jnp.arange(5)[None, :]
    p2 = a1p[:, idx2, :]                                        # (N, W2, 5, 128)
    a2 = prelu(jnp.einsum('nwkc,kdc->nwd', p2, p['w2f'], precision=hp)
               + p['b2f'][:, 0], a_c2)                          # (N, W2, 64)

    # squeeze + batch_first LSTM  ->  time-major scan
    h_seq = jnp.transpose(a2, (2, 0, 1))                        # (T=64, N, W2)
    for l in range(L):
        wih_t = p[f'lstm{l}_wih_t']
        whh_t = p[f'lstm{l}_whh_t']
        b = p[f'lstm{l}_b']

        def step(carry, x_t, wih_t=wih_t, whh_t=whh_t, b=b):
            h, c = carry
            g = (jnp.dot(x_t, wih_t, precision=hp)
                 + jnp.dot(h, whh_t, precision=hp) + b)
            i = jax.nn.sigmoid(g[:, 0 * H:1 * H])
            f = jax.nn.sigmoid(g[:, 1 * H:2 * H])
            gg = jnp.tanh(g[:, 2 * H:3 * H])
            o = jax.nn.sigmoid(g[:, 3 * H:4 * H])
            c = f * c + i * gg
            h = o * jnp.tanh(c)
            return (h, c), h

        init = (jnp.zeros((N, H), jnp.float32), jnp.zeros((N, H), jnp.float32))
        _, h_seq = lax.scan(step, init, h_seq)

    last = h_seq[-1]
    f1 = prelu(jnp.dot(last, p['fc1_wt'], precision=hp) + p['fc1_b'], a_f1)
    return prelu(jnp.dot(f1, p['fc2_wt'], precision=hp) + p['fc2_b'], a_f2)


if __name__ == "__main__":
    # Shapes consistent with the module:
    #   x: (N=2, C=1, H=1, W=16) -> conv stack -> (N, 64, W-4=12)
    #   LSTM: input_dim = 12, hidden_dim = 32, layer_dim = 2, output_dim = 8
    N, W = 2, 16
    input_dim, hidden_dim, layer_dim, output_dim = W - 4, 32, 2, 8

    key = jax.random.PRNGKey(0)
    kx, kp = jax.random.split(key)
    x = jax.random.normal(kx, (N, 1, 1, W), jnp.float32)
    params = init_params(kp, input_dim, hidden_dim, layer_dim, output_dim)

    out = jax.block_until_ready(cldnn_forward(x, params))
    ref = jax.block_until_ready(reference_forward(x, params))

    assert out.shape == (N, output_dim)
    np.testing.assert_allclose(np.asarray(out), np.asarray(ref),
                               rtol=2e-2, atol=2e-2)
    print("KERNEL_OK")
</pallas_src>

<mosaic_0001>
module attributes {stable_mosaic.version = 11 : i64} {
  func.func @kernel(%arg0: i32, %arg1: memref<2x1x16xf32, #tpu.memory_space<vmem>>, %arg2: memref<3x128x1xf32, #tpu.memory_space<vmem>>, %arg3: memref<128x1xf32, #tpu.memory_space<vmem>>, %arg4: memref<5x64x128xf32, #tpu.memory_space<vmem>>, %arg5: memref<64x1xf32, #tpu.memory_space<vmem>>, %arg6: memref<12x128xf32, #tpu.memory_space<vmem>>, %arg7: memref<32x128xf32, #tpu.memory_space<vmem>>, %arg8: memref<1x128xf32, #tpu.memory_space<vmem>>, %arg9: memref<32x128xf32, #tpu.memory_space<vmem>>, %arg10: memref<32x128xf32, #tpu.memory_space<vmem>>, %arg11: memref<1x128xf32, #tpu.memory_space<vmem>>, %arg12: memref<32x32xf32, #tpu.memory_space<vmem>>, %arg13: memref<1x32xf32, #tpu.memory_space<vmem>>, %arg14: memref<32x8xf32, #tpu.memory_space<vmem>>, %arg15: memref<1x8xf32, #tpu.memory_space<vmem>>, %arg16: memref<4xf32, #tpu.memory_space<smem>>, %arg17: memref<2x8xf32, #tpu.memory_space<vmem>>, %arg18: memref<128x16xf32, #tpu.memory_space<vmem>>, %arg19: memref<128x128xf32, #tpu.memory_space<vmem>>) attributes {dimension_semantics = [#tpu.dimension_semantics<parallel>], iteration_bounds = array<i64: 1>, scalar_prefetch = 0 : i64, scratch_operands = 2 : i64, tpu.core_type = #tpu.core_type<tc>, window_params = [{transform_indices = @transform_0, window_bounds = array<i64: 2, 1, 16>}, {pipeline_mode = #tpu.pipeline_mode<synchronous>, transform_indices = @transform_1, window_bounds = array<i64: 3, 128, 1>}, {pipeline_mode = #tpu.pipeline_mode<synchronous>, transform_indices = @transform_2, window_bounds = array<i64: 128, 1>}, {pipeline_mode = #tpu.pipeline_mode<synchronous>, transform_indices = @transform_3, window_bounds = array<i64: 5, 64, 128>}, {pipeline_mode = #tpu.pipeline_mode<synchronous>, transform_indices = @transform_4, window_bounds = array<i64: 64, 1>}, {pipeline_mode = #tpu.pipeline_mode<synchronous>, transform_indices = @transform_5, window_bounds = array<i64: 12, 128>}, {pipeline_mode = #tpu.pipeline_mode<synchronous>, transform_indices = @transform_6, window_bounds = array<i64: 32, 128>}, {pipeline_mode = #tpu.pipeline_mode<synchronous>, transform_indices = @transform_7, window_bounds = array<i64: 1, 128>}, {pipeline_mode = #tpu.pipeline_mode<synchronous>, transform_indices = @transform_8, window_bounds = array<i64: 32, 128>}, {pipeline_mode = #tpu.pipeline_mode<synchronous>, transform_indices = @transform_9, window_bounds = array<i64: 32, 128>}, {pipeline_mode = #tpu.pipeline_mode<synchronous>, transform_indices = @transform_10, window_bounds = array<i64: 1, 128>}, {pipeline_mode = #tpu.pipeline_mode<synchronous>, transform_indices = @transform_11, window_bounds = array<i64: 32, 32>}, {pipeline_mode = #tpu.pipeline_mode<synchronous>, transform_indices = @transform_12, window_bounds = array<i64: 1, 32>}, {pipeline_mode = #tpu.pipeline_mode<synchronous>, transform_indices = @transform_13, window_bounds = array<i64: 32, 8>}, {pipeline_mode = #tpu.pipeline_mode<synchronous>, transform_indices = @transform_14, window_bounds = array<i64: 1, 8>}, {transform_indices = @transform_15, window_bounds = array<i64: 4>}, {transform_indices = @transform_16, window_bounds = array<i64: 2, 8>}]} {
    %c0 = arith.constant 0 : index
    %0 = memref.load %arg16[%c0] : memref<4xf32, #tpu.memory_space<smem>>
    %c1 = arith.constant 1 : index
    %1 = memref.load %arg16[%c1] : memref<4xf32, #tpu.memory_space<smem>>
    %c2 = arith.constant 2 : index
    %2 = memref.load %arg16[%c2] : memref<4xf32, #tpu.memory_space<smem>>
    %c3 = arith.constant 3 : index
    %3 = memref.load %arg16[%c3] : memref<4xf32, #tpu.memory_space<smem>>
    %c0_0 = arith.constant 0 : index
    %c0_1 = arith.constant 0 : index
    %c0_2 = arith.constant 0 : index
    %4 = vector.load %arg2[%c0_0, %c0_1, %c0_2] : memref<3x128x1xf32, #tpu.memory_space<vmem>>, vector<1x128x1xf32>
    %5 = vector.shape_cast %4 : vector<1x128x1xf32> to vector<128x1xf32>
    %c1_3 = arith.constant 1 : index
    %c0_4 = arith.constant 0 : index
    %c0_5 = arith.constant 0 : index
    %6 = vector.load %arg2[%c1_3, %c0_4, %c0_5] : memref<3x128x1xf32, #tpu.memory_space<vmem>>, vector<1x128x1xf32>
    %7 = vector.shape_cast %6 : vector<1x128x1xf32> to vector<128x1xf32>
    %c2_6 = arith.constant 2 : index
    %c0_7 = arith.constant 0 : index
    %c0_8 = arith.constant 0 : index
    %8 = vector.load %arg2[%c2_6, %c0_7, %c0_8] : memref<3x128x1xf32, #tpu.memory_space<vmem>>, vector<1x128x1xf32>
    %9 = vector.shape_cast %8 : vector<1x128x1xf32> to vector<128x1xf32>
    %c0_9 = arith.constant 0 : index
    %c0_10 = arith.constant 0 : index
    %10 = vector.load %arg3[%c0_9, %c0_10] : memref<128x1xf32, #tpu.memory_space<vmem>>, vector<128x1xf32>
    %c0_11 = arith.constant 0 : index
    %c0_12 = arith.constant 0 : index
    %c0_13 = arith.constant 0 : index
    %11 = vector.load %arg4[%c0_11, %c0_12, %c0_13] : memref<5x64x128xf32, #tpu.memory_space<vmem>>, vector<1x64x128xf32>
    %12 = vector.shape_cast %11 : vector<1x64x128xf32> to vector<64x128xf32>
    %c1_14 = arith.constant 1 : index
    %c0_15 = arith.constant 0 : index
    %c0_16 = arith.constant 0 : index
    %13 = vector.load %arg4[%c1_14, %c0_15, %c0_16] : memref<5x64x128xf32, #tpu.memory_space<vmem>>, vector<1x64x128xf32>
    %14 = vector.shape_cast %13 : vector<1x64x128xf32> to vector<64x128xf32>
    %c2_17 = arith.constant 2 : index
    %c0_18 = arith.constant 0 : index
    %c0_19 = arith.constant 0 : index
    %15 = vector.load %arg4[%c2_17, %c0_18, %c0_19] : memref<5x64x128xf32, #tpu.memory_space<vmem>>, vector<1x64x128xf32>
    %16 = vector.shape_cast %15 : vector<1x64x128xf32> to vector<64x128xf32>
    %c3_20 = arith.constant 3 : index
    %c0_21 = arith.constant 0 : index
    %c0_22 = arith.constant 0 : index
    %17 = vector.load %arg4[%c3_20, %c0_21, %c0_22] : memref<5x64x128xf32, #tpu.memory_space<vmem>>, vector<1x64x128xf32>
    %18 = vector.shape_cast %17 : vector<1x64x128xf32> to vector<64x128xf32>
    %c4 = arith.constant 4 : index
    %c0_23 = arith.constant 0 : index
    %c0_24 = arith.constant 0 : index
    %19 = vector.load %arg4[%c4, %c0_23, %c0_24] : memref<5x64x128xf32, #tpu.memory_space<vmem>>, vector<1x64x128xf32>
    %20 = vector.shape_cast %19 : vector<1x64x128xf32> to vector<64x128xf32>
    %c0_25 = arith.constant 0 : index
    %c0_26 = arith.constant 0 : index
    %21 = vector.load %arg5[%c0_25, %c0_26] : memref<64x1xf32, #tpu.memory_space<vmem>>, vector<64x1xf32>
    %c0_27 = arith.constant 0 : index
    %c0_28 = arith.constant 0 : index
    %22 = vector.load %arg6[%c0_27, %c0_28] : memref<12x128xf32, #tpu.memory_space<vmem>>, vector<12x128xf32>
    %c0_29 = arith.constant 0 : index
    %c0_30 = arith.constant 0 : index
    %23 = vector.load %arg9[%c0_29, %c0_30] : memref<32x128xf32, #tpu.memory_space<vmem>>, vector<32x128xf32>
    %c0_31 = arith.constant 0 : index
    %c0_32 = arith.constant 0 : index
    %24 = vector.load %arg7[%c0_31, %c0_32] : memref<32x128xf32, #tpu.memory_space<vmem>>, vector<32x128xf32>
    %c0_33 = arith.constant 0 : index
    %c0_34 = arith.constant 0 : index
    %25 = vector.load %arg10[%c0_33, %c0_34] : memref<32x128xf32, #tpu.memory_space<vmem>>, vector<32x128xf32>
    %c0_35 = arith.constant 0 : index
    %c0_36 = arith.constant 0 : index
    %26 = vector.load %arg8[%c0_35, %c0_36] : memref<1x128xf32, #tpu.memory_space<vmem>>, vector<1x128xf32>
    %c0_37 = arith.constant 0 : index
    %c0_38 = arith.constant 0 : index
    %27 = vector.load %arg11[%c0_37, %c0_38] : memref<1x128xf32, #tpu.memory_space<vmem>>, vector<1x128xf32>
    %28 = vector.shape_cast %27 : vector<1x128xf32> to vector<1x128xf32>
    %29 = vector.broadcast %28 : vector<1x128xf32> to vector<2x128xf32>
    %cst = arith.constant 0.000000e+00 : f32
    %30 = vector.broadcast %cst : f32 to vector<128x16xf32>
    %c0_39 = arith.constant 0 : index
    %c0_40 = arith.constant 0 : index
    %31 = vector.load %arg18[%c0_39, %c0_40] : memref<128x16xf32, #tpu.memory_space<vmem>>, vector<128x16xf32>
    tpu.vector_store %arg18[%c0_39, %c0_40], %30 {strides = array<i32>} : memref<128x16xf32, #tpu.memory_space<vmem>>, vector<128x16xf32>,
    %c0_41 = arith.constant 0 : index
    %c0_42 = arith.constant 0 : index
    %c0_43 = arith.constant 0 : index
    %32 = vector.load %arg1[%c0_41, %c0_42, %c0_43] : memref<2x1x16xf32, #tpu.memory_space<vmem>>, vector<1x1x16xf32>
    %33 = vector.shape_cast %32 : vector<1x1x16xf32> to vector<1x16xf32>
    %34 = vector.extract_strided_slice %33 {offsets = [0, 0], sizes = [1, 14], strides = [1, 1]} : vector<1x16xf32> to vector<1x14xf32>
    %35 = vector.broadcast %5 : vector<128x1xf32> to vector<128x14xf32>
    %36 = vector.broadcast %34 : vector<1x14xf32> to vector<128x14xf32>
    %37 = arith.mulf %35, %36 : vector<128x14xf32>
    %38 = vector.extract_strided_slice %33 {offsets = [0, 1], sizes = [1, 14], strides = [1, 1]} : vector<1x16xf32> to vector<1x14xf32>
    %39 = vector.broadcast %7 : vector<128x1xf32> to vector<128x14xf32>
    %40 = vector.broadcast %38 : vector<1x14xf32> to vector<128x14xf32>
    %41 = arith.mulf %39, %40 : vector<128x14xf32>
    %42 = arith.addf %37, %41 : vector<128x14xf32>
    %43 = vector.extract_strided_slice %33 {offsets = [0, 2], sizes = [1, 14], strides = [1, 1]} : vector<1x16xf32> to vector<1x14xf32>
    %44 = vector.broadcast %9 : vector<128x1xf32> to vector<128x14xf32>
    %45 = vector.broadcast %43 : vector<1x14xf32> to vector<128x14xf32>
    %46 = arith.mulf %44, %45 : vector<128x14xf32>
    %47 = arith.addf %42, %46 : vector<128x14xf32>
    %48 = vector.broadcast %10 : vector<128x1xf32> to vector<128x14xf32>
    %49 = arith.addf %47, %48 : vector<128x14xf32>
    %cst_44 = arith.constant 0.000000e+00 : f32
    %50 = vector.broadcast %cst_44 : f32 to vector<128x14xf32>
    %51 = arith.cmpf ogt, %49, %50 : vector<128x14xf32>
    %52 = vector.broadcast %0 : f32 to vector<128x14xf32>
    %53 = arith.mulf %52, %49 : vector<128x14xf32>
    %54 = arith.select %51, %49, %53 : vector<128x14xi1>, vector<128x14xf32>
    %c0_45 = arith.constant 0 : index
    %c1_46 = arith.constant 1 : index
    %55 = vector.load %arg18[%c0_45, %c1_46] : memref<128x16xf32, #tpu.memory_space<vmem>>, vector<128x14xf32>
    tpu.vector_store %arg18[%c0_45, %c1_46], %54 {strides = array<i32>} : memref<128x16xf32, #tpu.memory_space<vmem>>, vector<128x14xf32>,
    %c0_47 = arith.constant 0 : index
    %c0_48 = arith.constant 0 : index
    %56 = vector.load %arg18[%c0_47, %c0_48] : memref<128x16xf32, #tpu.memory_space<vmem>>, vector<128x12xf32>
    %cst_49 = arith.constant dense<0.000000e+00> : vector<64x12xf32>
    %57 = tpu.matmul %12, %56, %cst_49 {dimension_numbers = #tpu.dot_dimension_numbers<[1], [0], [0], [1], [0, 0, 1, 1], [], []>} : vector<64x128xf32>, vector<128x12xf32>, vector<64x12xf32> -> vector<64x12xf32>
    %c0_50 = arith.constant 0 : index
    %c1_51 = arith.constant 1 : index
    %58 = vector.load %arg18[%c0_50, %c1_51] : memref<128x16xf32, #tpu.memory_space<vmem>>, vector<128x12xf32>
    %cst_52 = arith.constant dense<0.000000e+00> : vector<64x12xf32>
    %59 = tpu.matmul %14, %58, %cst_52 {dimension_numbers = #tpu.dot_dimension_numbers<[1], [0], [0], [1], [0, 0, 1, 1], [], []>} : vector<64x128xf32>, vector<128x12xf32>, vector<64x12xf32> -> vector<64x12xf32>
    %60 = arith.addf %57, %59 : vector<64x12xf32>
    %c0_53 = arith.constant 0 : index
    %c2_54 = arith.constant 2 : index
    %61 = vector.load %arg18[%c0_53, %c2_54] : memref<128x16xf32, #tpu.memory_space<vmem>>, vector<128x12xf32>
    %cst_55 = arith.constant dense<0.000000e+00> : vector<64x12xf32>
    %62 = tpu.matmul %16, %61, %cst_55 {dimension_numbers = #tpu.dot_dimension_numbers<[1], [0], [0], [1], [0, 0, 1, 1], [], []>} : vector<64x128xf32>, vector<128x12xf32>, vector<64x12xf32> -> vector<64x12xf32>
    %63 = arith.addf %60, %62 : vector<64x12xf32>
    %c0_56 = arith.constant 0 : index
    %c3_57 = arith.constant 3 : index
    %64 = vector.load %arg18[%c0_56, %c3_57] : memref<128x16xf32, #tpu.memory_space<vmem>>, vector<128x12xf32>
    %cst_58 = arith.constant dense<0.000000e+00> : vector<64x12xf32>
    %65 = tpu.matmul %18, %64, %cst_58 {dimension_numbers = #tpu.dot_dimension_numbers<[1], [0], [0], [1], [0, 0, 1, 1], [], []>} : vector<64x128xf32>, vector<128x12xf32>, vector<64x12xf32> -> vector<64x12xf32>
    %66 = arith.addf %63, %65 : vector<64x12xf32>
    %c0_59 = arith.constant 0 : index
    %c4_60 = arith.constant 4 : index
    %67 = vector.load %arg18[%c0_59, %c4_60] : memref<128x16xf32, #tpu.memory_space<vmem>>, vector<128x12xf32>
    %cst_61 = arith.constant dense<0.000000e+00> : vector<64x12xf32>
    %68 = tpu.matmul %20, %67, %cst_61 {dimension_numbers = #tpu.dot_dimension_numbers<[1], [0], [0], [1], [0, 0, 1, 1], [], []>} : vector<64x128xf32>, vector<128x12xf32>, vector<64x12xf32> -> vector<64x12xf32>
    %69 = arith.addf %66, %68 : vector<64x12xf32>
    %70 = vector.broadcast %21 : vector<64x1xf32> to vector<64x12xf32>
    %71 = arith.addf %69, %70 : vector<64x12xf32>
    %cst_62 = arith.constant 0.000000e+00 : f32
    %72 = vector.broadcast %cst_62 : f32 to vector<64x12xf32>
    %73 = arith.cmpf ogt, %71, %72 : vector<64x12xf32>
    %74 = vector.broadcast %1 : f32 to vector<64x12xf32>
    %75 = arith.mulf %74, %71 : vector<64x12xf32>
    %76 = arith.select %73, %71, %75 : vector<64x12xi1>, vector<64x12xf32>
    %cst_63 = arith.constant dense<0.000000e+00> : vector<64x128xf32>
    %77 = tpu.matmul %76, %22, %cst_63 {dimension_numbers = #tpu.dot_dimension_numbers<[1], [0], [0], [1], [0, 0, 1, 1], [], []>} : vector<64x12xf32>, vector<12x128xf32>, vector<64x128xf32> -> vector<64x128xf32>
    %78 = vector.broadcast %26 : vector<1x128xf32> to vector<64x128xf32>
    %79 = arith.addf %77, %78 : vector<64x128xf32>
    %c0_64 = arith.constant 0 : index
    %c0_65 = arith.constant 0 : index
    %80 = vector.load %arg19[%c0_64, %c0_65] : memref<128x128xf32, #tpu.memory_space<vmem>>, vector<64x128xf32>
    tpu.vector_store %arg19[%c0_64, %c0_65], %79 {strides = array<i32>} : memref<128x128xf32, #tpu.memory_space<vmem>>, vector<64x128xf32>,
    %c1_66 = arith.constant 1 : index
    %c0_67 = arith.constant 0 : index
    %c0_68 = arith.constant 0 : index
    %81 = vector.load %arg1[%c1_66, %c0_67, %c0_68] : memref<2x1x16xf32, #tpu.memory_space<vmem>>, vector<1x1x16xf32>
    %82 = vector.shape_cast %81 : vector<1x1x16xf32> to vector<1x16xf32>
    %83 = vector.extract_strided_slice %82 {offsets = [0, 0], sizes = [1, 14], strides = [1, 1]} : vector<1x16xf32> to vector<1x14xf32>
    %84 = vector.broadcast %5 : vector<128x1xf32> to vector<128x14xf32>
    %85 = vector.broadcast %83 : vector<1x14xf32> to vector<128x14xf32>
    %86 = arith.mulf %84, %85 : vector<128x14xf32>
    %87 = vector.extract_strided_slice %82 {offsets = [0, 1], sizes = [1, 14], strides = [1, 1]} : vector<1x16xf32> to vector<1x14xf32>
    %88 = vector.broadcast %7 : vector<128x1xf32> to vector<128x14xf32>
    %89 = vector.broadcast %87 : vector<1x14xf32> to vector<128x14xf32>
    %90 = arith.mulf %88, %89 : vector<128x14xf32>
    %91 = arith.addf %86, %90 : vector<128x14xf32>
    %92 = vector.extract_strided_slice %82 {offsets = [0, 2], sizes = [1, 14], strides = [1, 1]} : vector<1x16xf32> to vector<1x14xf32>
    %93 = vector.broadcast %9 : vector<128x1xf32> to vector<128x14xf32>
    %94 = vector.broadcast %92 : vector<1x14xf32> to vector<128x14xf32>
    %95 = arith.mulf %93, %94 : vector<128x14xf32>
    %96 = arith.addf %91, %95 : vector<128x14xf32>
    %97 = vector.broadcast %10 : vector<128x1xf32> to vector<128x14xf32>
    %98 = arith.addf %96, %97 : vector<128x14xf32>
    %cst_69 = arith.constant 0.000000e+00 : f32
    %99 = vector.broadcast %cst_69 : f32 to vector<128x14xf32>
    %100 = arith.cmpf ogt, %98, %99 : vector<128x14xf32>
    %101 = vector.broadcast %0 : f32 to vector<128x14xf32>
    %102 = arith.mulf %101, %98 : vector<128x14xf32>
    %103 = arith.select %100, %98, %102 : vector<128x14xi1>, vector<128x14xf32>
    %c0_70 = arith.constant 0 : index
    %c1_71 = arith.constant 1 : index
    %104 = vector.load %arg18[%c0_70, %c1_71] : memref<128x16xf32, #tpu.memory_space<vmem>>, vector<128x14xf32>
    tpu.vector_store %arg18[%c0_70, %c1_71], %103 {strides = array<i32>} : memref<128x16xf32, #tpu.memory_space<vmem>>, vector<128x14xf32>,
    %c0_72 = arith.constant 0 : index
    %c0_73 = arith.constant 0 : index
    %105 = vector.load %arg18[%c0_72, %c0_73] : memref<128x16xf32, #tpu.memory_space<vmem>>, vector<128x12xf32>
    %cst_74 = arith.constant dense<0.000000e+00> : vector<64x12xf32>
    %106 = tpu.matmul %12, %105, %cst_74 {dimension_numbers = #tpu.dot_dimension_numbers<[1], [0], [0], [1], [0, 0, 1, 1], [], []>} : vector<64x128xf32>, vector<128x12xf32>, vector<64x12xf32> -> vector<64x12xf32>
    %c0_75 = arith.constant 0 : index
    %c1_76 = arith.constant 1 : index
    %107 = vector.load %arg18[%c0_75, %c1_76] : memref<128x16xf32, #tpu.memory_space<vmem>>, vector<128x12xf32>
    %cst_77 = arith.constant dense<0.000000e+00> : vector<64x12xf32>
    %108 = tpu.matmul %14, %107, %cst_77 {dimension_numbers = #tpu.dot_dimension_numbers<[1], [0], [0], [1], [0, 0, 1, 1], [], []>} : vector<64x128xf32>, vector<128x12xf32>, vector<64x12xf32> -> vector<64x12xf32>
    %109 = arith.addf %106, %108 : vector<64x12xf32>
    %c0_78 = arith.constant 0 : index
    %c2_79 = arith.constant 2 : index
    %110 = vector.load %arg18[%c0_78, %c2_79] : memref<128x16xf32, #tpu.memory_space<vmem>>, vector<128x12xf32>
    %cst_80 = arith.constant dense<0.000000e+00> : vector<64x12xf32>
    %111 = tpu.matmul %16, %110, %cst_80 {dimension_numbers = #tpu.dot_dimension_numbers<[1], [0], [0], [1], [0, 0, 1, 1], [], []>} : vector<64x128xf32>, vector<128x12xf32>, vector<64x12xf32> -> vector<64x12xf32>
    %112 = arith.addf %109, %111 : vector<64x12xf32>
    %c0_81 = arith.constant 0 : index
    %c3_82 = arith.constant 3 : index
    %113 = vector.load %arg18[%c0_81, %c3_82] : memref<128x16xf32, #tpu.memory_space<vmem>>, vector<128x12xf32>
    %cst_83 = arith.constant dense<0.000000e+00> : vector<64x12xf32>
    %114 = tpu.matmul %18, %113, %cst_83 {dimension_numbers = #tpu.dot_dimension_numbers<[1], [0], [0], [1], [0, 0, 1, 1], [], []>} : vector<64x128xf32>, vector<128x12xf32>, vector<64x12xf32> -> vector<64x12xf32>
    %115 = arith.addf %112, %114 : vector<64x12xf32>
    %c0_84 = arith.constant 0 : index
    %c4_85 = arith.constant 4 : index
    %116 = vector.load %arg18[%c0_84, %c4_85] : memref<128x16xf32, #tpu.memory_space<vmem>>, vector<128x12xf32>
    %cst_86 = arith.constant dense<0.000000e+00> : vector<64x12xf32>
    %117 = tpu.matmul %20, %116, %cst_86 {dimension_numbers = #tpu.dot_dimension_numbers<[1], [0], [0], [1], [0, 0, 1, 1], [], []>} : vector<64x128xf32>, vector<128x12xf32>, vector<64x12xf32> -> vector<64x12xf32>
    %118 = arith.addf %115, %117 : vector<64x12xf32>
    %119 = vector.broadcast %21 : vector<64x1xf32> to vector<64x12xf32>
    %120 = arith.addf %118, %119 : vector<64x12xf32>
    %cst_87 = arith.constant 0.000000e+00 : f32
    %121 = vector.broadcast %cst_87 : f32 to vector<64x12xf32>
    %122 = arith.cmpf ogt, %120, %121 : vector<64x12xf32>
    %123 = vector.broadcast %1 : f32 to vector<64x12xf32>
    %124 = arith.mulf %123, %120 : vector<64x12xf32>
    %125 = arith.select %122, %120, %124 : vector<64x12xi1>, vector<64x12xf32>
    %cst_88 = arith.constant dense<0.000000e+00> : vector<64x128xf32>
    %126 = tpu.matmul %125, %22, %cst_88 {dimension_numbers = #tpu.dot_dimension_numbers<[1], [0], [0], [1], [0, 0, 1, 1], [], []>} : vector<64x12xf32>, vector<12x128xf32>, vector<64x128xf32> -> vector<64x128xf32>
    %127 = vector.broadcast %26 : vector<1x128xf32> to vector<64x128xf32>
    %128 = arith.addf %126, %127 : vector<64x128xf32>
    %c64 = arith.constant 64 : index
    %c0_89 = arith.constant 0 : index
    %129 = vector.load %arg19[%c64, %c0_89] : memref<128x128xf32, #tpu.memory_space<vmem>>, vector<64x128xf32>
    tpu.vector_store %arg19[%c64, %c0_89], %128 {strides = array<i32>} : memref<128x128xf32, #tpu.memory_space<vmem>>, vector<64x128xf32>,
    %cst_90 = arith.constant 0.000000e+00 : f32
    %130 = vector.broadcast %cst_90 : f32 to vector<2x32xf32>
    %c0_i32 = arith.constant 0 : i32
    %c64_i32 = arith.constant 64 : i32
    %131 = arith.addi %c0_i32, %c64_i32 : i32
    %c1_i32 = arith.constant 1 : i32
    %132:4 = scf.for %arg20 = %c0_i32 to %131 step %c1_i32 iter_args(%arg21 = %130, %arg22 = %130, %arg23 = %130, %arg24 = %130) -> (vector<2x32xf32>, vector<2x32xf32>, vector<2x32xf32>, vector<2x32xf32>)  : i32 {
      %c0_i32_106 = arith.constant 0 : i32
      %154 = arith.addi %c0_i32_106, %arg20 : i32
      %155 = arith.index_cast %154 : i32 to index
      %c0_107 = arith.constant 0 : index
      %156 = vector.load %arg19[%155, %c0_107] : memref<128x128xf32, #tpu.memory_space<vmem>>, vector<1x128xf32>
      %c64_i32_108 = arith.constant 64 : i32
      %157 = arith.addi %c64_i32_108, %arg20 : i32
      %158 = arith.index_cast %157 : i32 to index
      %c0_109 = arith.constant 0 : index
      %159 = vector.load %arg19[%158, %c0_109] : memref<128x128xf32, #tpu.memory_space<vmem>>, vector<1x128xf32>
      %160 = tpu.concatenate %156, %159 in 0 : vector<1x128xf32>, vector<1x128xf32> -> vector<2x128xf32>
      %cst_110 = arith.constant dense<0.000000e+00> : vector<2x128xf32>
      %161 = tpu.matmul %arg21, %24, %cst_110 {dimension_numbers = #tpu.dot_dimension_numbers<[1], [0], [0], [1], [0, 0, 1, 1], [], []>} : vector<2x32xf32>, vector<32x128xf32>, vector<2x128xf32> -> vector<2x128xf32>
      %162 = arith.addf %160, %161 : vector<2x128xf32>
      %163 = vector.extract_strided_slice %162 {offsets = [0, 0], sizes = [2, 32], strides = [1, 1]} : vector<2x128xf32> to vector<2x32xf32>
      %164 = arith.negf %163 : vector<2x32xf32>
      %165 = math.exp %164 : vector<2x32xf32>
      %cst_111 = arith.constant 1.000000e+00 : f32
      %166 = vector.broadcast %cst_111 : f32 to vector<2x32xf32>
      %167 = arith.addf %166, %165 : vector<2x32xf32>
      %168 = arith.divf %166, %167 : vector<2x32xf32>
      %169 = vector.extract_strided_slice %162 {offsets = [0, 32], sizes = [2, 32], strides = [1, 1]} : vector<2x128xf32> to vector<2x32xf32>
      %170 = arith.negf %169 : vector<2x32xf32>
      %171 = math.exp %170 : vector<2x32xf32>
      %cst_112 = arith.constant 1.000000e+00 : f32
      %172 = vector.broadcast %cst_112 : f32 to vector<2x32xf32>
      %173 = arith.addf %172, %171 : vector<2x32xf32>
      %174 = arith.divf %172, %173 : vector<2x32xf32>
      %175 = vector.extract_strided_slice %162 {offsets = [0, 64], sizes = [2, 32], strides = [1, 1]} : vector<2x128xf32> to vector<2x32xf32>
      %176 = math.tanh %175 : vector<2x32xf32>
      %177 = vector.extract_strided_slice %162 {offsets = [0, 96], sizes = [2, 32], strides = [1, 1]} : vector<2x128xf32> to vector<2x32xf32>
      %178 = arith.negf %177 : vector<2x32xf32>
      %179 = math.exp %178 : vector<2x32xf32>
      %cst_113 = arith.constant 1.000000e+00 : f32
      %180 = vector.broadcast %cst_113 : f32 to vector<2x32xf32>
      %181 = arith.addf %180, %179 : vector<2x32xf32>
      %182 = arith.divf %180, %181 : vector<2x32xf32>
      %183 = arith.mulf %174, %arg23 : vector<2x32xf32>
      %184 = arith.mulf %168, %176 : vector<2x32xf32>
      %185 = arith.addf %183, %184 : vector<2x32xf32>
      %186 = math.tanh %185 : vector<2x32xf32>
      %187 = arith.mulf %182, %186 : vector<2x32xf32>
      %cst_114 = arith.constant dense<0.000000e+00> : vector<2x128xf32>
      %188 = tpu.matmul %187, %23, %cst_114 {dimension_numbers = #tpu.dot_dimension_numbers<[1], [0], [0], [1], [0, 0, 1, 1], [], []>} : vector<2x32xf32>, vector<32x128xf32>, vector<2x128xf32> -> vector<2x128xf32>
      %cst_115 = arith.constant dense<0.000000e+00> : vector<2x128xf32>
      %189 = tpu.matmul %arg22, %25, %cst_115 {dimension_numbers = #tpu.dot_dimension_numbers<[1], [0], [0], [1], [0, 0, 1, 1], [], []>} : vector<2x32xf32>, vector<32x128xf32>, vector<2x128xf32> -> vector<2x128xf32>
      %190 = arith.addf %188, %189 : vector<2x128xf32>
      %191 = arith.addf %190, %29 : vector<2x128xf32>
      %192 = vector.extract_strided_slice %191 {offsets = [0, 0], sizes = [2, 32], strides = [1, 1]} : vector<2x128xf32> to vector<2x32xf32>
      %193 = arith.negf %192 : vector<2x32xf32>
      %194 = math.exp %193 : vector<2x32xf32>
      %cst_116 = arith.constant 1.000000e+00 : f32
      %195 = vector.broadcast %cst_116 : f32 to vector<2x32xf32>
      %196 = arith.addf %195, %194 : vector<2x32xf32>
      %197 = arith.divf %195, %196 : vector<2x32xf32>
      %198 = vector.extract_strided_slice %191 {offsets = [0, 32], sizes = [2, 32], strides = [1, 1]} : vector<2x128xf32> to vector<2x32xf32>
      %199 = arith.negf %198 : vector<2x32xf32>
      %200 = math.exp %199 : vector<2x32xf32>
      %cst_117 = arith.constant 1.000000e+00 : f32
      %201 = vector.broadcast %cst_117 : f32 to vector<2x32xf32>
      %202 = arith.addf %201, %200 : vector<2x32xf32>
      %203 = arith.divf %201, %202 : vector<2x32xf32>
      %204 = vector.extract_strided_slice %191 {offsets = [0, 64], sizes = [2, 32], strides = [1, 1]} : vector<2x128xf32> to vector<2x32xf32>
      %205 = math.tanh %204 : vector<2x32xf32>
      %206 = vector.extract_strided_slice %191 {offsets = [0, 96], sizes = [2, 32], strides = [1, 1]} : vector<2x128xf32> to vector<2x32xf32>
      %207 = arith.negf %206 : vector<2x32xf32>
      %208 = math.exp %207 : vector<2x32xf32>
      %cst_118 = arith.constant 1.000000e+00 : f32
      %209 = vector.broadcast %cst_118 : f32 to vector<2x32xf32>
      %210 = arith.addf %209, %208 : vector<2x32xf32>
      %211 = arith.divf %209, %210 : vector<2x32xf32>
      %212 = arith.mulf %203, %arg24 : vector<2x32xf32>
      %213 = arith.mulf %197, %205 : vector<2x32xf32>
      %214 = arith.addf %212, %213 : vector<2x32xf32>
      %215 = math.tanh %214 : vector<2x32xf32>
      %216 = arith.mulf %211, %215 : vector<2x32xf32>
      scf.yield %187, %216, %185, %214 : vector<2x32xf32>, vector<2x32xf32>, vector<2x32xf32>, vector<2x32xf32>
    }
    %c64_i32_91 = arith.constant 64 : i32
    %c0_92 = arith.constant 0 : index
    %c0_93 = arith.constant 0 : index
    %133 = vector.load %arg12[%c0_92, %c0_93] : memref<32x32xf32, #tpu.memory_space<vmem>>, vector<32x32xf32>
    %cst_94 = arith.constant dense<0.000000e+00> : vector<2x32xf32>
    %134 = tpu.matmul %132#1, %133, %cst_94 {dimension_numbers = #tpu.dot_dimension_numbers<[1], [0], [0], [1], [0, 0, 1, 1], [], []>} : vector<2x32xf32>, vector<32x32xf32>, vector<2x32xf32> -> vector<2x32xf32>
    %c0_95 = arith.constant 0 : index
    %c0_96 = arith.constant 0 : index
    %135 = vector.load %arg13[%c0_95, %c0_96] : memref<1x32xf32, #tpu.memory_space<vmem>>, vector<1x32xf32>
    %136 = vector.broadcast %135 : vector<1x32xf32> to vector<2x32xf32>
    %137 = arith.addf %134, %136 : vector<2x32xf32>
    %cst_97 = arith.constant 0.000000e+00 : f32
    %138 = vector.broadcast %cst_97 : f32 to vector<2x32xf32>
    %139 = arith.cmpf ogt, %137, %138 : vector<2x32xf32>
    %140 = vector.broadcast %2 : f32 to vector<2x32xf32>
    %141 = arith.mulf %140, %137 : vector<2x32xf32>
    %142 = arith.select %139, %137, %141 : vector<2x32xi1>, vector<2x32xf32>
    %c0_98 = arith.constant 0 : index
    %c0_99 = arith.constant 0 : index
    %143 = vector.load %arg14[%c0_98, %c0_99] : memref<32x8xf32, #tpu.memory_space<vmem>>, vector<32x8xf32>
    %cst_100 = arith.constant dense<0.000000e+00> : vector<2x8xf32>
    %144 = tpu.matmul %142, %143, %cst_100 {dimension_numbers = #tpu.dot_dimension_numbers<[1], [0], [0], [1], [0, 0, 1, 1], [], []>} : vector<2x32xf32>, vector<32x8xf32>, vector<2x8xf32> -> vector<2x8xf32>
    %c0_101 = arith.constant 0 : index
    %c0_102 = arith.constant 0 : index
    %145 = vector.load %arg15[%c0_101, %c0_102] : memref<1x8xf32, #tpu.memory_space<vmem>>, vector<1x8xf32>
    %146 = vector.broadcast %145 : vector<1x8xf32> to vector<2x8xf32>
    %147 = arith.addf %144, %146 : vector<2x8xf32>
    %cst_103 = arith.constant 0.000000e+00 : f32
    %148 = vector.broadcast %cst_103 : f32 to vector<2x8xf32>
    %149 = arith.cmpf ogt, %147, %148 : vector<2x8xf32>
    %150 = vector.broadcast %3 : f32 to vector<2x8xf32>
    %151 = arith.mulf %150, %147 : vector<2x8xf32>
    %152 = arith.select %149, %147, %151 : vector<2x8xi1>, vector<2x8xf32>
    %c0_104 = arith.constant 0 : index
    %c0_105 = arith.constant 0 : index
    %153 = vector.load %arg17[%c0_104, %c0_105] : memref<2x8xf32, #tpu.memory_space<vmem>>, vector<2x8xf32>
    tpu.vector_store %arg17[%c0_104, %c0_105], %152 {strides = array<i32>} : memref<2x8xf32, #tpu.memory_space<vmem>>, vector<2x8xf32>,
    return
  }
  func.func @transform_0(%arg0: i32) -> (i32, i32, i32) {
    %c0_i32 = arith.constant 0 : i32
    %c0_i32_0 = arith.constant 0 : i32
    %c0_i32_1 = arith.constant 0 : i32
    return %arg0, %c0_i32, %c0_i32_0 : i32, i32, i32
  }
  func.func @transform_1(%arg0: i32) -> (i32, i32, i32) {
    %c0_i32 = arith.constant 0 : i32
    %c0_i32_0 = arith.constant 0 : i32
    %c0_i32_1 = arith.constant 0 : i32
    %c0_i32_2 = arith.constant 0 : i32
    return %c0_i32, %c0_i32_0, %c0_i32_1 : i32, i32, i32
  }
  func.func @transform_2(%arg0: i32) -> (i32, i32) {
    %c0_i32 = arith.constant 0 : i32
    %c0_i32_0 = arith.constant 0 : i32
    %c0_i32_1 = arith.constant 0 : i32
    return %c0_i32, %c0_i32_0 : i32, i32
  }
  func.func @transform_3(%arg0: i32) -> (i32, i32, i32) {
    %c0_i32 = arith.constant 0 : i32
    %c0_i32_0 = arith.constant 0 : i32
    %c0_i32_1 = arith.constant 0 : i32
    %c0_i32_2 = arith.constant 0 : i32
    return %c0_i32, %c0_i32_0, %c0_i32_1 : i32, i32, i32
  }
  func.func @transform_4(%arg0: i32) -> (i32, i32) {
    %c0_i32 = arith.constant 0 : i32
    %c0_i32_0 = arith.constant 0 : i32
    %c0_i32_1 = arith.constant 0 : i32
    return %c0_i32, %c0_i32_0 : i32, i32
  }
  func.func @transform_5(%arg0: i32) -> (i32, i32) {
    %c0_i32 = arith.constant 0 : i32
    %c0_i32_0 = arith.constant 0 : i32
    %c0_i32_1 = arith.constant 0 : i32
    return %c0_i32, %c0_i32_0 : i32, i32
  }
  func.func @transform_6(%arg0: i32) -> (i32, i32) {
    %c0_i32 = arith.constant 0 : i32
    %c0_i32_0 = arith.constant 0 : i32
    %c0_i32_1 = arith.constant 0 : i32
    return %c0_i32, %c0_i32_0 : i32, i32
  }
  func.func @transform_7(%arg0: i32) -> (i32, i32) {
    %c0_i32 = arith.constant 0 : i32
    %c0_i32_0 = arith.constant 0 : i32
    %c0_i32_1 = arith.constant 0 : i32
    return %c0_i32, %c0_i32_0 : i32, i32
  }
  func.func @transform_8(%arg0: i32) -> (i32, i32) {
    %c0_i32 = arith.constant 0 : i32
    %c0_i32_0 = arith.constant 0 : i32
    %c0_i32_1 = arith.constant 0 : i32
    return %c0_i32, %c0_i32_0 : i32, i32
  }
  func.func @transform_9(%arg0: i32) -> (i32, i32) {
    %c0_i32 = arith.constant 0 : i32
    %c0_i32_0 = arith.constant 0 : i32
    %c0_i32_1 = arith.constant 0 : i32
    return %c0_i32, %c0_i32_0 : i32, i32
  }
  func.func @transform_10(%arg0: i32) -> (i32, i32) {
    %c0_i32 = arith.constant 0 : i32
    %c0_i32_0 = arith.constant 0 : i32
    %c0_i32_1 = arith.constant 0 : i32
    return %c0_i32, %c0_i32_0 : i32, i32
  }
  func.func @transform_11(%arg0: i32) -> (i32, i32) {
    %c0_i32 = arith.constant 0 : i32
    %c0_i32_0 = arith.constant 0 : i32
    %c0_i32_1 = arith.constant 0 : i32
    return %c0_i32, %c0_i32_0 : i32, i32
  }
  func.func @transform_12(%arg0: i32) -> (i32, i32) {
    %c0_i32 = arith.constant 0 : i32
    %c0_i32_0 = arith.constant 0 : i32
    %c0_i32_1 = arith.constant 0 : i32
    return %c0_i32, %c0_i32_0 : i32, i32
  }
  func.func @transform_13(%arg0: i32) -> (i32, i32) {
    %c0_i32 = arith.constant 0 : i32
    %c0_i32_0 = arith.constant 0 : i32
    %c0_i32_1 = arith.constant 0 : i32
    return %c0_i32, %c0_i32_0 : i32, i32
  }
  func.func @transform_14(%arg0: i32) -> (i32, i32) {
    %c0_i32 = arith.constant 0 : i32
    %c0_i32_0 = arith.constant 0 : i32
    %c0_i32_1 = arith.constant 0 : i32
    return %c0_i32, %c0_i32_0 : i32, i32
  }
  func.func @transform_15(%arg0: i32) -> i32 {
    %c0_i32 = arith.constant 0 : i32
    %c0_i32_0 = arith.constant 0 : i32
    return %c0_i32 : i32
  }
  func.func @transform_16(%arg0: i32) -> (i32, i32) {
    %c0_i32 = arith.constant 0 : i32
    %c0_i32_0 = arith.constant 0 : i32
    return %arg0, %c0_i32 : i32, i32
  }
}

</mosaic_0001>

<llo_original>
// kernel: tpu_custom_call.1
$region0: #{tpu_custom_call.1}
  #allocation0 [shape = 'u32[]', space=smem, size = 0x4, offset = 0x4, fixed_abs, tag = 'smem constant byte address 0x4 - core index']
  #allocation1 [shape = 'u32[72,128]{1,0:T(1,128)}', space=vmem, size = 0x9000, scoped, tag = 'internal scratch']
  #allocation2 [shape = 'f32[128,16]{1,0:T(8,128)}', space=vmem, size = 0x10000, scoped, tag = 'scratch operand']
  #allocation3 [shape = 'f32[128,128]{1,0:T(8,128)}', space=vmem, size = 0x10000, scoped, tag = 'scratch operand']
  %s0 = inlined_call_operand.vmem [shape: f32[2,1,16], index: 0, kind: input, shape index: {}]
  %s1 = inlined_call_operand.vmem [shape: f32[3,128,1], index: 1, kind: input, shape index: {}]
  %s2 = inlined_call_operand.vmem [shape: f32[128,1], index: 2, kind: input, shape index: {}]
  %s3 = inlined_call_operand.vmem [shape: f32[5,64,128], index: 3, kind: input, shape index: {}]
  %s4 = inlined_call_operand.vmem [shape: f32[64,1], index: 4, kind: input, shape index: {}]
  %s5 = inlined_call_operand.vmem [shape: f32[12,128], index: 5, kind: input, shape index: {}]
  %s6 = inlined_call_operand.vmem [shape: f32[32,128], index: 6, kind: input, shape index: {}]
  %s7 = inlined_call_operand.vmem [shape: f32[1,128], index: 7, kind: input, shape index: {}]
  %s8 = inlined_call_operand.vmem [shape: f32[32,128], index: 8, kind: input, shape index: {}]
  %s9 = inlined_call_operand.vmem [shape: f32[32,128], index: 9, kind: input, shape index: {}]
  %s10 = inlined_call_operand.vmem [shape: f32[1,128], index: 10, kind: input, shape index: {}]
  %s11 = inlined_call_operand.vmem [shape: f32[32,32], index: 11, kind: input, shape index: {}]
  %s12 = inlined_call_operand.vmem [shape: f32[1,32], index: 12, kind: input, shape index: {}]
  %s13 = inlined_call_operand.vmem [shape: f32[32,8], index: 13, kind: input, shape index: {}]
  %s14 = inlined_call_operand.vmem [shape: f32[1,8], index: 14, kind: input, shape index: {}]
  %s15 = inlined_call_operand.vmem [shape: f32[4], index: 15, kind: input, shape index: {}]
  %s16 = inlined_call_operand.hbm [shape: f32[2,8], index: 16, kind: output, shape index: {}]
  %s17 = sld [smem:[#allocation0]]
  $region85: #{tpu_custom_call.1} parent=0
    _
  %s19 = ssub.s32 1, %s17
  %s20 = scalar_select 0, %s19, %s17
  $region1: #{tpu_custom_call.1} parent=0
    #allocation4 [shape = 'u8[512]{0}', space=smem, size = 0x200, scoped, tag = 'input window, operand 15, single buffered']
    #allocation5 [shape = 's32[1]{0}', space=sflag, size = 0x4, scoped, tag = 'scoped memory for tpu_custom_call.1']
    #allocation6 [shape = 's32[1]{0}', space=sflag, size = 0x4, scoped, tag = 'scoped memory for tpu_custom_call.1']
    #allocation7 [shape = 'u8[1024]{0}', space=vmem, size = 0x400, scoped, tag = 'output window, operand 0, single buffered']
    %21 = vsyncpa [#allocation6], 0
    %22 = vsyncpa [#allocation5], 0
    // Predicated region
    $region2: #{tpu_custom_call.1} parent=1 // pred_check
      _
    $region3: #{tpu_custom_call.1} parent=1 // pred_check_branch
      %24 = sbr.rel (0) target = $region5
    $region4: #{tpu_custom_call.1} parent=1 // pred_region
      _
    $region5: #{tpu_custom_call.1} parent=1 // pred_fallthru
      _
    // Predicated region
    $region6: #{tpu_custom_call.1} parent=1 // pred_check
      _
    $region7: #{tpu_custom_call.1} parent=1 // pred_check_branch
      %26 = sbr.rel (0) target = $region9
    $region8: #{tpu_custom_call.1} parent=1 // pred_region
      _
    $region9: #{tpu_custom_call.1} parent=1 // pred_fallthru
      _
    // Predicated region
    $region10: #{tpu_custom_call.1} parent=1 // pred_check
      _
    $region11: #{tpu_custom_call.1} parent=1 // pred_check_branch
      %28 = sbr.rel (0) target = $region13
    $region12: #{tpu_custom_call.1} parent=1 // pred_region
      _
    $region13: #{tpu_custom_call.1} parent=1 // pred_fallthru
      _
    // Predicated region
    $region14: #{tpu_custom_call.1} parent=1 // pred_check
      _
    $region15: #{tpu_custom_call.1} parent=1 // pred_check_branch
      %30 = sbr.rel (0) target = $region17
    $region16: #{tpu_custom_call.1} parent=1 // pred_region
      _
    $region17: #{tpu_custom_call.1} parent=1 // pred_fallthru
      _
    // Predicated region
    $region18: #{tpu_custom_call.1} parent=1 // pred_check
      _
    $region19: #{tpu_custom_call.1} parent=1 // pred_check_branch
      %32 = sbr.rel (0) target = $region21
    $region20: #{tpu_custom_call.1} parent=1 // pred_region
      _
    $region21: #{tpu_custom_call.1} parent=1 // pred_fallthru
      _
    // Predicated region
    $region22: #{tpu_custom_call.1} parent=1 // pred_check
      _
    $region23: #{tpu_custom_call.1} parent=1 // pred_check_branch
      %34 = sbr.rel (0) target = $region25
    $region24: #{tpu_custom_call.1} parent=1 // pred_region
      _
    $region25: #{tpu_custom_call.1} parent=1 // pred_fallthru
      _
    // Predicated region
    $region26: #{tpu_custom_call.1} parent=1 // pred_check
      _
    $region27: #{tpu_custom_call.1} parent=1 // pred_check_branch
      %36 = sbr.rel (0) target = $region29
    $region28: #{tpu_custom_call.1} parent=1 // pred_region
      _
    $region29: #{tpu_custom_call.1} parent=1 // pred_fallthru
      _
    // Predicated region
    $region30: #{tpu_custom_call.1} parent=1 // pred_check
      _
    $region31: #{tpu_custom_call.1} parent=1 // pred_check_branch
      %38 = sbr.rel (0) target = $region33
    $region32: #{tpu_custom_call.1} parent=1 // pred_region
      _
    $region33: #{tpu_custom_call.1} parent=1 // pred_fallthru
      _
    // Predicated region
    $region34: #{tpu_custom_call.1} parent=1 // pred_check
      _
    $region35: #{tpu_custom_call.1} parent=1 // pred_check_branch
      %40 = sbr.rel (0) target = $region37
    $region36: #{tpu_custom_call.1} parent=1 // pred_region
      _
    $region37: #{tpu_custom_call.1} parent=1 // pred_fallthru
      _
    // Predicated region
    $region38: #{tpu_custom_call.1} parent=1 // pred_check
      _
    $region39: #{tpu_custom_call.1} parent=1 // pred_check_branch
      %42 = sbr.rel (0) target = $region41
    $region40: #{tpu_custom_call.1} parent=1 // pred_region
      _
    $region41: #{tpu_custom_call.1} parent=1 // pred_fallthru
      _
    // Predicated region
    $region42: #{tpu_custom_call.1} parent=1 // pred_check
      _
    $region43: #{tpu_custom_call.1} parent=1 // pred_check_branch
      %44 = sbr.rel (0) target = $region45
    $region44: #{tpu_custom_call.1} parent=1 // pred_region
      _
    $region45: #{tpu_custom_call.1} parent=1 // pred_fallthru
      _
    // Predicated region
    $region46: #{tpu_custom_call.1} parent=1 // pred_check
      _
    $region47: #{tpu_custom_call.1} parent=1 // pred_check_branch
      %46 = sbr.rel (0) target = $region49
    $region48: #{tpu_custom_call.1} parent=1 // pred_region
      _
    $region49: #{tpu_custom_call.1} parent=1 // pred_fallthru
      _
    // Predicated region
    $region50: #{tpu_custom_call.1} parent=1 // pred_check
      _
    $region51: #{tpu_custom_call.1} parent=1 // pred_check_branch
      %48 = sbr.rel (0) target = $region53
    $region52: #{tpu_custom_call.1} parent=1 // pred_region
      _
    $region53: #{tpu_custom_call.1} parent=1 // pred_fallthru
      _
    // Predicated region
    $region54: #{tpu_custom_call.1} parent=1 // pred_check
      _
    $region55: #{tpu_custom_call.1} parent=1 // pred_check_branch
      %50 = sbr.rel (0) target = $region57
    $region56: #{tpu_custom_call.1} parent=1 // pred_region
      _
    $region57: #{tpu_custom_call.1} parent=1 // pred_fallthru
      _
    // Predicated region
    $region58: #{tpu_custom_call.1} parent=1 // pred_check
      _
    $region59: #{tpu_custom_call.1} parent=1 // pred_check_branch
      %52 = sbr.rel (0) target = $region61
    $region60: #{tpu_custom_call.1} parent=1 // pred_region
      _
    $region61: #{tpu_custom_call.1} parent=1 // pred_fallthru
      _
    // Predicated region
    $region62: #{tpu_custom_call.1} parent=1 // pred_check
      _
    $region63: #{tpu_custom_call.1} parent=1 // pred_check_branch
      %54 = sbr.rel (0) target = $region65
    $region64: #{tpu_custom_call.1} parent=1 // pred_region
      %56 = vsyncadd [#allocation6], 0
      %s58 = sshll.u32 %s15, 4
      %s59 = int_to_ptr.vmem [resolvable:$true] %s58
      %61 = dma.vmem_to_smem %s59, 16, [#allocation4], [#allocation6]
    $region65: #{tpu_custom_call.1} parent=1 // pred_fallthru
      _
    // Predicated region
    $region66: #{tpu_custom_call.1} parent=1 // pred_check
      _
    $region67: #{tpu_custom_call.1} parent=1 // pred_check_branch
      %63 = sbr.rel (0) target = $region69
    $region68: #{tpu_custom_call.1} parent=1 // pred_region
      %65 = dma.done [#allocation6], 16
    $region69: #{tpu_custom_call.1} parent=1 // pred_fallthru
      _
    %66 = sfence
    %s67 = sld [smem:[#allocation4]]
    %s68 = sld [smem:[#allocation4 + $0x1]]
    %s69 = sld [smem:[#allocation4 + $0x2]]
    %s70 = sld [smem:[#allocation4 + $0x3]]
    %v71 = vld [vmem:[%s1] sm:$0xff]
    %v72 = vld [vmem:[%s1 + $0x8] sm:$0xff]
    %v73 = vld [vmem:[%s1 + $0x10] sm:$0xff]
    %v74 = vld [vmem:[%s1 + $0x18] sm:$0xff]
    %v75 = vld [vmem:[%s1 + $0x20] sm:$0xff]
    %v76 = vld [vmem:[%s1 + $0x28] sm:$0xff]
    %v77 = vld [vmem:[%s1 + $0x30] sm:$0xff]
    %v78 = vld [vmem:[%s1 + $0x38] sm:$0xff]
    %v79 = vld [vmem:[%s1 + $0x40] sm:$0xff]
    %v80 = vld [vmem:[%s1 + $0x48] sm:$0xff]
    %v81 = vld [vmem:[%s1 + $0x50] sm:$0xff]
    %v82 = vld [vmem:[%s1 + $0x58] sm:$0xff]
    %v83 = vld [vmem:[%s1 + $0x60] sm:$0xff]
    %v84 = vld [vmem:[%s1 + $0x68] sm:$0xff]
    %v85 = vld [vmem:[%s1 + $0x70] sm:$0xff]
    %v86 = vld [vmem:[%s1 + $0x78] sm:$0xff]
    %s87 = scalar_lea.vmem %s1, 128
    %v88 = vld [vmem:[%s87] sm:$0xff]
    %v89 = vld [vmem:[%s87 + $0x8] sm:$0xff]
    %v90 = vld [vmem:[%s87 + $0x10] sm:$0xff]
    %v91 = vld [vmem:[%s87 + $0x18] sm:$0xff]
    %v92 = vld [vmem:[%s87 + $0x20] sm:$0xff]
    %v93 = vld [vmem:[%s87 + $0x28] sm:$0xff]
    %v94 = vld [vmem:[%s87 + $0x30] sm:$0xff]
    %v95 = vld [vmem:[%s87 + $0x38] sm:$0xff]
    %v96 = vld [vmem:[%s87 + $0x40] sm:$0xff]
    %v97 = vld [vmem:[%s87 + $0x48] sm:$0xff]
    %v98 = vld [vmem:[%s87 + $0x50] sm:$0xff]
    %v99 = vld [vmem:[%s87 + $0x58] sm:$0xff]
    %v100 = vld [vmem:[%s87 + $0x60] sm:$0xff]
    %v101 = vld [vmem:[%s87 + $0x68] sm:$0xff]
    %v102 = vld [vmem:[%s87 + $0x70] sm:$0xff]
    %v103 = vld [vmem:[%s87 + $0x78] sm:$0xff]
    %s104 = scalar_lea.vmem %s1, 256
    %v105 = vld [vmem:[%s104] sm:$0xff]
    %v106 = vld [vmem:[%s104 + $0x8] sm:$0xff]
    %v107 = vld [vmem:[%s104 + $0x10] sm:$0xff]
    %v108 = vld [vmem:[%s104 + $0x18] sm:$0xff]
    %v109 = vld [vmem:[%s104 + $0x20] sm:$0xff]
    %v110 = vld [vmem:[%s104 + $0x28] sm:$0xff]
    %v111 = vld [vmem:[%s104 + $0x30] sm:$0xff]
    %v112 = vld [vmem:[%s104 + $0x38] sm:$0xff]
    %v113 = vld [vmem:[%s104 + $0x40] sm:$0xff]
    %v114 = vld [vmem:[%s104 + $0x48] sm:$0xff]
    %v115 = vld [vmem:[%s104 + $0x50] sm:$0xff]
    %v116 = vld [vmem:[%s104 + $0x58] sm:$0xff]
    %v117 = vld [vmem:[%s104 + $0x60] sm:$0xff]
    %v118 = vld [vmem:[%s104 + $0x68] sm:$0xff]
    %v119 = vld [vmem:[%s104 + $0x70] sm:$0xff]
    %v120 = vld [vmem:[%s104 + $0x78] sm:$0xff]
    %v121 = vld [vmem:[%s2] sm:$0xff]
    %v122 = vld [vmem:[%s2 + $0x8] sm:$0xff]
    %v123 = vld [vmem:[%s2 + $0x10] sm:$0xff]
    %v124 = vld [vmem:[%s2 + $0x18] sm:$0xff]
    %v125 = vld [vmem:[%s2 + $0x20] sm:$0xff]
    %v126 = vld [vmem:[%s2 + $0x28] sm:$0xff]
    %v127 = vld [vmem:[%s2 + $0x30] sm:$0xff]
    %v128 = vld [vmem:[%s2 + $0x38] sm:$0xff]
    %v129 = vld [vmem:[%s2 + $0x40] sm:$0xff]
    %v130 = vld [vmem:[%s2 + $0x48] sm:$0xff]
    %v131 = vld [vmem:[%s2 + $0x50] sm:$0xff]
    %v132 = vld [vmem:[%s2 + $0x58] sm:$0xff]
    %v133 = vld [vmem:[%s2 + $0x60] sm:$0xff]
    %v134 = vld [vmem:[%s2 + $0x68] sm:$0xff]
    %v135 = vld [vmem:[%s2 + $0x70] sm:$0xff]
    %v136 = vld [vmem:[%s2 + $0x78] sm:$0xff]
    %v137 = vld [vmem:[%s3] sm:$0xff]
    %v138 = vld [vmem:[%s3 + $0x8] sm:$0xff]
    %v139 = vld [vmem:[%s3 + $0x10] sm:$0xff]
    %v140 = vld [vmem:[%s3 + $0x18] sm:$0xff]
    %v141 = vld [vmem:[%s3 + $0x20] sm:$0xff]
    %v142 = vld [vmem:[%s3 + $0x28] sm:$0xff]
    %v143 = vld [vmem:[%s3 + $0x30] sm:$0xff]
    %v144 = vld [vmem:[%s3 + $0x38] sm:$0xff]
    %s145 = scalar_lea.vmem %s3, 64
    %v146 = vld [vmem:[%s145] sm:$0xff]
    %v147 = vld [vmem:[%s145 + $0x8] sm:$0xff]
    %v148 = vld [vmem:[%s145 + $0x10] sm:$0xff]
    %v149 = vld [vmem:[%s145 + $0x18] sm:$0xff]
    %v150 = vld [vmem:[%s145 + $0x20] sm:$0xff]
    %v151 = vld [vmem:[%s145 + $0x28] sm:$0xff]
    %v152 = vld [vmem:[%s145 + $0x30] sm:$0xff]
    %v153 = vld [vmem:[%s145 + $0x38] sm:$0xff]
    %s154 = scalar_lea.vmem %s3, 128
    %v155 = vld [vmem:[%s154] sm:$0xff]
    %v156 = vld [vmem:[%s154 + $0x8] sm:$0xff]
    %v157 = vld [vmem:[%s154 + $0x10] sm:$0xff]
    %v158 = vld [vmem:[%s154 + $0x18] sm:$0xff]
    %v159 = vld [vmem:[%s154 + $0x20] sm:$0xff]
    %v160 = vld [vmem:[%s154 + $0x28] sm:$0xff]
    %v161 = vld [vmem:[%s154 + $0x30] sm:$0xff]
    %v162 = vld [vmem:[%s154 + $0x38] sm:$0xff]
    %s163 = scalar_lea.vmem %s3, 192
    %v164 = vld [vmem:[%s163] sm:$0xff]
    %v165 = vld [vmem:[%s163 + $0x8] sm:$0xff]
    %v166 = vld [vmem:[%s163 + $0x10] sm:$0xff]
    %v167 = vld [vmem:[%s163 + $0x18] sm:$0xff]
    %v168 = vld [vmem:[%s163 + $0x20] sm:$0xff]
    %v169 = vld [vmem:[%s163 + $0x28] sm:$0xff]
    %v170 = vld [vmem:[%s163 + $0x30] sm:$0xff]
    %v171 = vld [vmem:[%s163 + $0x38] sm:$0xff]
    %s172 = scalar_lea.vmem %s3, 256
    %v173 = vld [vmem:[%s172] sm:$0xff]
    %v174 = vld [vmem:[%s172 + $0x8] sm:$0xff]
    %v175 = vld [vmem:[%s172 + $0x10] sm:$0xff]
    %v176 = vld [vmem:[%s172 + $0x18] sm:$0xff]
    %v177 = vld [vmem:[%s172 + $0x20] sm:$0xff]
    %v178 = vld [vmem:[%s172 + $0x28] sm:$0xff]
    %v179 = vld [vmem:[%s172 + $0x30] sm:$0xff]
    %v180 = vld [vmem:[%s172 + $0x38] sm:$0xff]
    %v181 = vld [vmem:[%s4] sm:$0xff]
    %v182 = vld [vmem:[%s4 + $0x8] sm:$0xff]
    %v183 = vld [vmem:[%s4 + $0x10] sm:$0xff]
    %v184 = vld [vmem:[%s4 + $0x18] sm:$0xff]
    %v185 = vld [vmem:[%s4 + $0x20] sm:$0xff]
    %v186 = vld [vmem:[%s4 + $0x28] sm:$0xff]
    %v187 = vld [vmem:[%s4 + $0x30] sm:$0xff]
    %v188 = vld [vmem:[%s4 + $0x38] sm:$0xff]
    %v189 = vld [vmem:[%s5] sm:$0xff]
    %v190 = vld [vmem:[%s5 + $0x8] sm:$0xf]
    %v191 = vld [vmem:[%s8] sm:$0xff]
    %v192 = vld [vmem:[%s8 + $0x8] sm:$0xff]
    %v193 = vld [vmem:[%s8 + $0x10] sm:$0xff]
    %v194 = vld [vmem:[%s8 + $0x18] sm:$0xff]
    %v195 = vld [vmem:[%s6] sm:$0xff]
    %v196 = vld [vmem:[%s6 + $0x8] sm:$0xff]
    %v197 = vld [vmem:[%s6 + $0x10] sm:$0xff]
    %v198 = vld [vmem:[%s6 + $0x18] sm:$0xff]
    %v199 = vld [vmem:[%s9] sm:$0xff]
    %v200 = vld [vmem:[%s9 + $0x8] sm:$0xff]
    %v201 = vld [vmem:[%s9 + $0x10] sm:$0xff]
    %v202 = vld [vmem:[%s9 + $0x18] sm:$0xff]
    %v203 = vld [vmem:[%s7] sm:$0x1]
    %v204 = vld [vmem:[%s10] sm:$0x1]
    %v206 = vperm.slane %v204, 0
    %vm208 = vcmask 130048
    %209 = vst.msk [vmem:[#allocation2] sm:$0xff] %vm208, 0.0
    %210 = vst.msk [vmem:[#allocation2 + $0x8] sm:$0xff] %vm208, 0.0
    %211 = vst.msk [vmem:[#allocation2 + $0x10] sm:$0xff] %vm208, 0.0
    %212 = vst.msk [vmem:[#allocation2 + $0x18] sm:$0xff] %vm208, 0.0
    %213 = vst.msk [vmem:[#allocation2 + $0x20] sm:$0xff] %vm208, 0.0
    %214 = vst.msk [vmem:[#allocation2 + $0x28] sm:$0xff] %vm208, 0.0
    %215 = vst.msk [vmem:[#allocation2 + $0x30] sm:$0xff] %vm208, 0.0
    %216 = vst.msk [vmem:[#allocation2 + $0x38] sm:$0xff] %vm208, 0.0
    %217 = vst.msk [vmem:[#allocation2 + $0x40] sm:$0xff] %vm208, 0.0
    %218 = vst.msk [vmem:[#allocation2 + $0x48] sm:$0xff] %vm208, 0.0
    %219 = vst.msk [vmem:[#allocation2 + $0x50] sm:$0xff] %vm208, 0.0
    %220 = vst.msk [vmem:[#allocation2 + $0x58] sm:$0xff] %vm208, 0.0
    %221 = vst.msk [vmem:[#allocation2 + $0x60] sm:$0xff] %vm208, 0.0
    %222 = vst.msk [vmem:[#allocation2 + $0x68] sm:$0xff] %vm208, 0.0
    %223 = vst.msk [vmem:[#allocation2 + $0x70] sm:$0xff] %vm208, 0.0
    %224 = vst.msk [vmem:[#allocation2 + $0x78] sm:$0xff] %vm208, 0.0
    %v225 = vld [vmem:[%s0] sm:$0x1]
    %227 = vset.pattern.permute.xlu0 0
    %228 = vperm.xlu0 %227, %v71
    %v229 = vpop.permute.xlu0 %228
    %232 = vset.pattern.permute.xlu0 0
    %233 = vperm.xlu0 %232, %v72
    %v234 = vpop.permute.xlu0 %233
    %237 = vset.pattern.permute.xlu0 0
    %238 = vperm.xlu0 %237, %v73
    %v239 = vpop.permute.xlu0 %238
    %242 = vset.pattern.permute.xlu0 0
    %243 = vperm.xlu0 %242, %v74
    %v244 = vpop.permute.xlu0 %243
    %247 = vset.pattern.permute.xlu0 0
    %248 = vperm.xlu0 %247, %v75
    %v249 = vpop.permute.xlu0 %248
    %252 = vset.pattern.permute.xlu0 0
    %253 = vperm.xlu0 %252, %v76
    %v254 = vpop.permute.xlu0 %253
    %257 = vset.pattern.permute.xlu0 0
    %258 = vperm.xlu0 %257, %v77
    %v259 = vpop.permute.xlu0 %258
    %262 = vset.pattern.permute.xlu0 0
    %263 = vperm.xlu0 %262, %v78
    %v264 = vpop.permute.xlu0 %263
    %267 = vset.pattern.permute.xlu0 0
    %268 = vperm.xlu0 %267, %v79
    %v269 = vpop.permute.xlu0 %268
    %272 = vset.pattern.permute.xlu0 0
    %273 = vperm.xlu0 %272, %v80
    %v274 = vpop.permute.xlu0 %273
    %277 = vset.pattern.permute.xlu0 0
    %278 = vperm.xlu0 %277, %v81
    %v279 = vpop.permute.xlu0 %278
    %282 = vset.pattern.permute.xlu0 0
    %283 = vperm.xlu0 %282, %v82
    %v284 = vpop.permute.xlu0 %283
    %287 = vset.pattern.permute.xlu0 0
    %288 = vperm.xlu0 %287, %v83
    %v289 = vpop.permute.xlu0 %288
    %292 = vset.pattern.permute.xlu0 0
    %293 = vperm.xlu0 %292, %v84
    %v294 = vpop.permute.xlu0 %293
    %297 = vset.pattern.permute.xlu0 0
    %298 = vperm.xlu0 %297, %v85
    %v299 = vpop.permute.xlu0 %298
    %302 = vset.pattern.permute.xlu0 0
    %303 = vperm.xlu0 %302, %v86
    %v304 = vpop.permute.xlu0 %303
    %v307 = vperm.slane %v225, 0
    %v309 = vmul.f32 %v229, %v307
    %v310 = vmul.f32 %v234, %v307
    %v311 = vmul.f32 %v239, %v307
    %v312 = vmul.f32 %v244, %v307
    %v313 = vmul.f32 %v249, %v307
    %v314 = vmul.f32 %v254, %v307
    %v315 = vmul.f32 %v259, %v307
    %v316 = vmul.f32 %v264, %v307
    %v317 = vmul.f32 %v269, %v307
    %v318 = vmul.f32 %v274, %v307
    %v319 = vmul.f32 %v279, %v307
    %v320 = vmul.f32 %v284, %v307
    %v321 = vmul.f32 %v289, %v307
    %v322 = vmul.f32 %v294, %v307
    %v323 = vmul.f32 %v299, %v307
    %v324 = vmul.f32 %v304, %v307
    %326 = vset.pattern.permute.xlu0 0
    %327 = vperm.xlu0 %326, %v88
    %v328 = vpop.permute.xlu0 %327
    %331 = vset.pattern.permute.xlu0 0
    %332 = vperm.xlu0 %331, %v89
    %v333 = vpop.permute.xlu0 %332
    %336 = vset.pattern.permute.xlu0 0
    %337 = vperm.xlu0 %336, %v90
    %v338 = vpop.permute.xlu0 %337
    %341 = vset.pattern.permute.xlu0 0
    %342 = vperm.xlu0 %341, %v91
    %v343 = vpop.permute.xlu0 %342
    %346 = vset.pattern.permute.xlu0 0
    %347 = vperm.xlu0 %346, %v92
    %v348 = vpop.permute.xlu0 %347
    %351 = vset.pattern.permute.xlu0 0
    %352 = vperm.xlu0 %351, %v93
    %v353 = vpop.permute.xlu0 %352
    %356 = vset.pattern.permute.xlu0 0
    %357 = vperm.xlu0 %356, %v94
    %v358 = vpop.permute.xlu0 %357
    %361 = vset.pattern.permute.xlu0 0
    %362 = vperm.xlu0 %361, %v95
    %v363 = vpop.permute.xlu0 %362
    %366 = vset.pattern.permute.xlu0 0
    %367 = vperm.xlu0 %366, %v96
    %v368 = vpop.permute.xlu0 %367
    %371 = vset.pattern.permute.xlu0 0
    %372 = vperm.xlu0 %371, %v97
    %v373 = vpop.permute.xlu0 %372
    %376 = vset.pattern.permute.xlu0 0
    %377 = vperm.xlu0 %376, %v98
    %v378 = vpop.permute.xlu0 %377
    %381 = vset.pattern.permute.xlu0 0
    %382 = vperm.xlu0 %381, %v99
    %v383 = vpop.permute.xlu0 %382
    %386 = vset.pattern.permute.xlu0 0
    %387 = vperm.xlu0 %386, %v100
    %v388 = vpop.permute.xlu0 %387
    %391 = vset.pattern.permute.xlu0 0
    %392 = vperm.xlu0 %391, %v101
    %v393 = vpop.permute.xlu0 %392
    %396 = vset.pattern.permute.xlu0 0
    %397 = vperm.xlu0 %396, %v102
    %v398 = vpop.permute.xlu0 %397
    %401 = vset.pattern.permute.xlu0 0
    %402 = vperm.xlu0 %401, %v103
    %v403 = vpop.permute.xlu0 %402
    %v405 = vmul.f32 %v328, %v307
    %v406 = vmul.f32 %v333, %v307
    %v407 = vmul.f32 %v338, %v307
    %v408 = vmul.f32 %v343, %v307
    %v409 = vmul.f32 %v348, %v307
    %v410 = vmul.f32 %v353, %v307
    %v411 = vmul.f32 %v358, %v307
    %v412 = vmul.f32 %v363, %v307
    %v413 = vmul.f32 %v368, %v307
    %v414 = vmul.f32 %v373, %v307
    %v415 = vmul.f32 %v378, %v307
    %v416 = vmul.f32 %v383, %v307
    %v417 = vmul.f32 %v388, %v307
    %v418 = vmul.f32 %v393, %v307
    %v419 = vmul.f32 %v398, %v307
    %v420 = vmul.f32 %v403, %v307
    %437 = vrot.lane.b32.xlu0 %v405, 127
    %v438 = vpop.permute.xlu0 %437
    %439 = vrot.lane.b32.xlu0 %v406, 127
    %v440 = vpop.permute.xlu0 %439
    %441 = vrot.lane.b32.xlu0 %v407, 127
    %v442 = vpop.permute.xlu0 %441
    %443 = vrot.lane.b32.xlu0 %v408, 127
    %v444 = vpop.permute.xlu0 %443
    %445 = vrot.lane.b32.xlu0 %v409, 127
    %v446 = vpop.permute.xlu0 %445
    %447 = vrot.lane.b32.xlu0 %v410, 127
    %v448 = vpop.permute.xlu0 %447
    %449 = vrot.lane.b32.xlu0 %v411, 127
    %v450 = vpop.permute.xlu0 %449
    %451 = vrot.lane.b32.xlu0 %v412, 127
    %v452 = vpop.permute.xlu0 %451
    %453 = vrot.lane.b32.xlu0 %v413, 127
    %v454 = vpop.permute.xlu0 %453
    %455 = vrot.lane.b32.xlu0 %v414, 127
    %v456 = vpop.permute.xlu0 %455
    %457 = vrot.lane.b32.xlu0 %v415, 127
    %v458 = vpop.permute.xlu0 %457
    %459 = vrot.lane.b32.xlu0 %v416, 127
    %v460 = vpop.permute.xlu0 %459
    %461 = vrot.lane.b32.xlu0 %v417, 127
    %v462 = vpop.permute.xlu0 %461
    %463 = vrot.lane.b32.xlu0 %v418, 127
    %v464 = vpop.permute.xlu0 %463
    %465 = vrot.lane.b32.xlu0 %v419, 127
    %v466 = vpop.permute.xlu0 %465
    %467 = vrot.lane.b32.xlu0 %v420, 127
    %v468 = vpop.permute.xlu0 %467
    %v485 = vadd.f32 %v309, %v438
    %v486 = vadd.f32 %v310, %v440
    %v487 = vadd.f32 %v311, %v442
    %v488 = vadd.f32 %v312, %v444
    %v489 = vadd.f32 %v313, %v446
    %v490 = vadd.f32 %v314, %v448
    %v491 = vadd.f32 %v315, %v450
    %v492 = vadd.f32 %v316, %v452
    %v493 = vadd.f32 %v317, %v454
    %v494 = vadd.f32 %v318, %v456
    %v495 = vadd.f32 %v319, %v458
    %v496 = vadd.f32 %v320, %v460
    %v497 = vadd.f32 %v321, %v462
    %v498 = vadd.f32 %v322, %v464
    %v499 = vadd.f32 %v323, %v466
    %v500 = vadd.f32 %v324, %v468
    %502 = vset.pattern.permute.xlu0 0
    %503 = vperm.xlu0 %502, %v105
    %v504 = vpop.permute.xlu0 %503
    %507 = vset.pattern.permute.xlu0 0
    %508 = vperm.xlu0 %507, %v106
    %v509 = vpop.permute.xlu0 %508
    %512 = vset.pattern.permute.xlu0 0
    %513 = vperm.xlu0 %512, %v107
    %v514 = vpop.permute.xlu0 %513
    %517 = vset.pattern.permute.xlu0 0
    %518 = vperm.xlu0 %517, %v108
    %v519 = vpop.permute.xlu0 %518
    %522 = vset.pattern.permute.xlu0 0
    %523 = vperm.xlu0 %522, %v109
    %v524 = vpop.permute.xlu0 %523
    %527 = vset.pattern.permute.xlu0 0
    %528 = vperm.xlu0 %527, %v110
    %v529 = vpop.permute.xlu0 %528
    %532 = vset.pattern.permute.xlu0 0
    %533 = vperm.xlu0 %532, %v111
    %v534 = vpop.permute.xlu0 %533
    %537 = vset.pattern.permute.xlu0 0
    %538 = vperm.xlu0 %537, %v112
    %v539 = vpop.permute.xlu0 %538
    %542 = vset.pattern.permute.xlu0 0
    %543 = vperm.xlu0 %542, %v113
    %v544 = vpop.permute.xlu0 %543
    %547 = vset.pattern.permute.xlu0 0
    %548 = vperm.xlu0 %547, %v114
    %v549 = vpop.permute.xlu0 %548
    %552 = vset.pattern.permute.xlu0 0
    %553 = vperm.xlu0 %552, %v115
    %v554 = vpop.permute.xlu0 %553
    %557 = vset.pattern.permute.xlu0 0
    %558 = vperm.xlu0 %557, %v116
    %v559 = vpop.permute.xlu0 %558
    %562 = vset.pattern.permute.xlu0 0
    %563 = vperm.xlu0 %562, %v117
    %v564 = vpop.permute.xlu0 %563
    %567 = vset.pattern.permute.xlu0 0
    %568 = vperm.xlu0 %567, %v118
    %v569 = vpop.permute.xlu0 %568
    %572 = vset.pattern.permute.xlu0 0
    %573 = vperm.xlu0 %572, %v119
    %v574 = vpop.permute.xlu0 %573
    %577 = vset.pattern.permute.xlu0 0
    %578 = vperm.xlu0 %577, %v120
    %v579 = vpop.permute.xlu0 %578
    %v581 = vmul.f32 %v504, %v307
    %v582 = vmul.f32 %v509, %v307
    %v583 = vmul.f32 %v514, %v307
    %v584 = vmul.f32 %v519, %v307
    %v585 = vmul.f32 %v524, %v307
    %v586 = vmul.f32 %v529, %v307
    %v587 = vmul.f32 %v534, %v307
    %v588 = vmul.f32 %v539, %v307
    %v589 = vmul.f32 %v544, %v307
    %v590 = vmul.f32 %v549, %v307
    %v591 = vmul.f32 %v554, %v307
    %v592 = vmul.f32 %v559, %v307
    %v593 = vmul.f32 %v564, %v307
    %v594 = vmul.f32 %v569, %v307
    %v595 = vmul.f32 %v574, %v307
    %v596 = vmul.f32 %v579, %v307
    %613 = vrot.lane.b32.xlu0 %v581, 126
    %v614 = vpop.permute.xlu0 %613
    %615 = vrot.lane.b32.xlu0 %v582, 126
    %v616 = vpop.permute.xlu0 %615
    %617 = vrot.lane.b32.xlu0 %v583, 126
    %v618 = vpop.permute.xlu0 %617
    %619 = vrot.lane.b32.xlu0 %v584, 126
    %v620 = vpop.permute.xlu0 %619
    %621 = vrot.lane.b32.xlu0 %v585, 126
    %v622 = vpop.permute.xlu0 %621
    %623 = vrot.lane.b32.xlu0 %v586, 126
    %v624 = vpop.permute.xlu0 %623
    %625 = vrot.lane.b32.xlu0 %v587, 126
    %v626 = vpop.permute.xlu0 %625
    %627 = vrot.lane.b32.xlu0 %v588, 126
    %v628 = vpop.permute.xlu0 %627
    %629 = vrot.lane.b32.xlu0 %v589, 126
    %v630 = vpop.permute.xlu0 %629
    %631 = vrot.lane.b32.xlu0 %v590, 126
    %v632 = vpop.permute.xlu0 %631
    %633 = vrot.lane.b32.xlu0 %v591, 126
    %v634 = vpop.permute.xlu0 %633
    %635 = vrot.lane.b32.xlu0 %v592, 126
    %v636 = vpop.permute.xlu0 %635
    %637 = vrot.lane.b32.xlu0 %v593, 126
    %v638 = vpop.permute.xlu0 %637
    %639 = vrot.lane.b32.xlu0 %v594, 126
    %v640 = vpop.permute.xlu0 %639
    %641 = vrot.lane.b32.xlu0 %v595, 126
    %v642 = vpop.permute.xlu0 %641
    %643 = vrot.lane.b32.xlu0 %v596, 126
    %v644 = vpop.permute.xlu0 %643
    %v661 = vadd.f32 %v485, %v614
    %v662 = vadd.f32 %v486, %v616
    %v663 = vadd.f32 %v487, %v618
    %v664 = vadd.f32 %v488, %v620
    %v665 = vadd.f32 %v489, %v622
    %v666 = vadd.f32 %v490, %v624
    %v667 = vadd.f32 %v491, %v626
    %v668 = vadd.f32 %v492, %v628
    %v669 = vadd.f32 %v493, %v630
    %v670 = vadd.f32 %v494, %v632
    %v671 = vadd.f32 %v495, %v634
    %v672 = vadd.f32 %v496, %v636
    %v673 = vadd.f32 %v497, %v638
    %v674 = vadd.f32 %v498, %v640
    %v675 = vadd.f32 %v499, %v642
    %v676 = vadd.f32 %v500, %v644
    %678 = vset.pattern.permute.xlu0 0
    %679 = vperm.xlu0 %678, %v121
    %v680 = vpop.permute.xlu0 %679
    %683 = vset.pattern.permute.xlu0 0
    %684 = vperm.xlu0 %683, %v122
    %v685 = vpop.permute.xlu0 %684
    %688 = vset.pattern.permute.xlu0 0
    %689 = vperm.xlu0 %688, %v123
    %v690 = vpop.permute.xlu0 %689
    %693 = vset.pattern.permute.xlu0 0
    %694 = vperm.xlu0 %693, %v124
    %v695 = vpop.permute.xlu0 %694
    %698 = vset.pattern.permute.xlu0 0
    %699 = vperm.xlu0 %698, %v125
    %v700 = vpop.permute.xlu0 %699
    %703 = vset.pattern.permute.xlu0 0
    %704 = vperm.xlu0 %703, %v126
    %v705 = vpop.permute.xlu0 %704
    %708 = vset.pattern.permute.xlu0 0
    %709 = vperm.xlu0 %708, %v127
    %v710 = vpop.permute.xlu0 %709
    %713 = vset.pattern.permute.xlu0 0
    %714 = vperm.xlu0 %713, %v128
    %v715 = vpop.permute.xlu0 %714
    %718 = vset.pattern.permute.xlu0 0
    %719 = vperm.xlu0 %718, %v129
    %v720 = vpop.permute.xlu0 %719
    %723 = vset.pattern.permute.xlu0 0
    %724 = vperm.xlu0 %723, %v130
    %v725 = vpop.permute.xlu0 %724
    %728 = vset.pattern.permute.xlu0 0
    %729 = vperm.xlu0 %728, %v131
    %v730 = vpop.permute.xlu0 %729
    %733 = vset.pattern.permute.xlu0 0
    %734 = vperm.xlu0 %733, %v132
    %v735 = vpop.permute.xlu0 %734
    %738 = vset.pattern.permute.xlu0 0
    %739 = vperm.xlu0 %738, %v133
    %v740 = vpop.permute.xlu0 %739
    %743 = vset.pattern.permute.xlu0 0
    %744 = vperm.xlu0 %743, %v134
    %v745 = vpop.permute.xlu0 %744
    %748 = vset.pattern.permute.xlu0 0
    %749 = vperm.xlu0 %748, %v135
    %v750 = vpop.permute.xlu0 %749
    %753 = vset.pattern.permute.xlu0 0
    %754 = vperm.xlu0 %753, %v136
    %v755 = vpop.permute.xlu0 %754
    %v757 = vadd.f32 %v661, %v680
    %v758 = vadd.f32 %v662, %v685
    %v759 = vadd.f32 %v663, %v690
    %v760 = vadd.f32 %v664, %v695
    %v761 = vadd.f32 %v665, %v700
    %v762 = vadd.f32 %v666, %v705
    %v763 = vadd.f32 %v667, %v710
    %v764 = vadd.f32 %v668, %v715
    %v765 = vadd.f32 %v669, %v720
    %v766 = vadd.f32 %v670, %v725
    %v767 = vadd.f32 %v671, %v730
    %v768 = vadd.f32 %v672, %v735
    %v769 = vadd.f32 %v673, %v740
    %v770 = vadd.f32 %v674, %v745
    %v771 = vadd.f32 %v675, %v750
    %v772 = vadd.f32 %v676, %v755
    %vm773 = vcmp.gt.f32.partialorder %v757, 0.0
    %vm774 = vcmp.gt.f32.partialorder %v758, 0.0
    %vm775 = vcmp.gt.f32.partialorder %v759, 0.0
    %vm776 = vcmp.gt.f32.partialorder %v760, 0.0
    %vm777 = vcmp.gt.f32.partialorder %v761, 0.0
    %vm778 = vcmp.gt.f32.partialorder %v762, 0.0
    %vm779 = vcmp.gt.f32.partialorder %v763, 0.0
    %vm780 = vcmp.gt.f32.partialorder %v764, 0.0
    %vm781 = vcmp.gt.f32.partialorder %v765, 0.0
    %vm782 = vcmp.gt.f32.partialorder %v766, 0.0
    %vm783 = vcmp.gt.f32.partialorder %v767, 0.0
    %vm784 = vcmp.gt.f32.partialorder %v768, 0.0
    %vm785 = vcmp.gt.f32.partialorder %v769, 0.0
    %vm786 = vcmp.gt.f32.partialorder %v770, 0.0
    %vm787 = vcmp.gt.f32.partialorder %v771, 0.0
    %vm788 = vcmp.gt.f32.partialorder %v772, 0.0
    %v789 = vstv %s67
    %v790 = vmul.f32 %v789, %v757
    %v791 = vmul.f32 %v789, %v758
    %v792 = vmul.f32 %v789, %v759
    %v793 = vmul.f32 %v789, %v760
    %v794 = vmul.f32 %v789, %v761
    %v795 = vmul.f32 %v789, %v762
    %v796 = vmul.f32 %v789, %v763
    %v797 = vmul.f32 %v789, %v764
    %v798 = vmul.f32 %v789, %v765
    %v799 = vmul.f32 %v789, %v766
    %v800 = vmul.f32 %v789, %v767
    %v801 = vmul.f32 %v789, %v768
    %v802 = vmul.f32 %v789, %v769
    %v803 = vmul.f32 %v789, %v770
    %v804 = vmul.f32 %v789, %v771
    %v805 = vmul.f32 %v789, %v772
    %v806 = vsel %vm773, %v757, %v790
    %v807 = vsel %vm774, %v758, %v791
    %v808 = vsel %vm775, %v759, %v792
    %v809 = vsel %vm776, %v760, %v793
    %v810 = vsel %vm777, %v761, %v794
    %v811 = vsel %vm778, %v762, %v795
    %v812 = vsel %vm779, %v763, %v796
    %v813 = vsel %vm780, %v764, %v797
    %v814 = vsel %vm781, %v765, %v798
    %v815 = vsel %vm782, %v766, %v799
    %v816 = vsel %vm783, %v767, %v800
    %v817 = vsel %vm784, %v768, %v801
    %v818 = vsel %vm785, %v769, %v802
    %v819 = vsel %vm786, %v770, %v803
    %v820 = vsel %vm787, %v771, %v804
    %v821 = vsel %vm788, %v772, %v805
    %838 = vrot.lane.b32.xlu0 %v806, 1
    %v839 = vpop.permute.xlu0 %838
    %840 = vrot.lane.b32.xlu0 %v807, 1
    %v841 = vpop.permute.xlu0 %840
    %842 = vrot.lane.b32.xlu0 %v808, 1
    %v843 = vpop.permute.xlu0 %842
    %844 = vrot.lane.b32.xlu0 %v809, 1
    %v845 = vpop.permute.xlu0 %844
    %846 = vrot.lane.b32.xlu0 %v810, 1
    %v847 = vpop.permute.xlu0 %846
    %848 = vrot.lane.b32.xlu0 %v811, 1
    %v849 = vpop.permute.xlu0 %848
    %850 = vrot.lane.b32.xlu0 %v812, 1
    %v851 = vpop.permute.xlu0 %850
    %852 = vrot.lane.b32.xlu0 %v813, 1
    %v853 = vpop.permute.xlu0 %852
    %854 = vrot.lane.b32.xlu0 %v814, 1
    %v855 = vpop.permute.xlu0 %854
    %856 = vrot.lane.b32.xlu0 %v815, 1
    %v857 = vpop.permute.xlu0 %856
    %858 = vrot.lane.b32.xlu0 %v816, 1
    %v859 = vpop.permute.xlu0 %858
    %860 = vrot.lane.b32.xlu0 %v817, 1
    %v861 = vpop.permute.xlu0 %860
    %862 = vrot.lane.b32.xlu0 %v818, 1
    %v863 = vpop.permute.xlu0 %862
    %864 = vrot.lane.b32.xlu0 %v819, 1
    %v865 = vpop.permute.xlu0 %864
    %866 = vrot.lane.b32.xlu0 %v820, 1
    %v867 = vpop.permute.xlu0 %866
    %868 = vrot.lane.b32.xlu0 %v821, 1
    %v869 = vpop.permute.xlu0 %868
    %vm886 = vcmask 121864
    %887 = vst.msk [vmem:[#allocation2] sm:$0xff] %vm886, %v839
    %888 = vst.msk [vmem:[#allocation2 + $0x8] sm:$0xff] %vm886, %v841
    %889 = vst.msk [vmem:[#allocation2 + $0x10] sm:$0xff] %vm886, %v843
    %890 = vst.msk [vmem:[#allocation2 + $0x18] sm:$0xff] %vm886, %v845
    %891 = vst.msk [vmem:[#allocation2 + $0x20] sm:$0xff] %vm886, %v847
    %892 = vst.msk [vmem:[#allocation2 + $0x28] sm:$0xff] %vm886, %v849
    %893 = vst.msk [vmem:[#allocation2 + $0x30] sm:$0xff] %vm886, %v851
    %894 = vst.msk [vmem:[#allocation2 + $0x38] sm:$0xff] %vm886, %v853
    %895 = vst.msk [vmem:[#allocation2 + $0x40] sm:$0xff] %vm886, %v855
    %896 = vst.msk [vmem:[#allocation2 + $0x48] sm:$0xff] %vm886, %v857
    %897 = vst.msk [vmem:[#allocation2 + $0x50] sm:$0xff] %vm886, %v859
    %898 = vst.msk [vmem:[#allocation2 + $0x58] sm:$0xff] %vm886, %v861
    %899 = vst.msk [vmem:[#allocation2 + $0x60] sm:$0xff] %vm886, %v863
    %900 = vst.msk [vmem:[#allocation2 + $0x68] sm:$0xff] %vm886, %v865
    %901 = vst.msk [vmem:[#allocation2 + $0x70] sm:$0xff] %vm886, %v867
    %902 = vst.msk [vmem:[#allocation2 + $0x78] sm:$0xff] %vm886, %v869
    %v903 = vld [vmem:[#allocation2] sm:$0xff]
    %v904 = vld [vmem:[#allocation2 + $0x8] sm:$0xff]
    %v905 = vld [vmem:[#allocation2 + $0x10] sm:$0xff]
    %v906 = vld [vmem:[#allocation2 + $0x18] sm:$0xff]
    %v907 = vld [vmem:[#allocation2 + $0x20] sm:$0xff]
    %v908 = vld [vmem:[#allocation2 + $0x28] sm:$0xff]
    %v909 = vld [vmem:[#allocation2 + $0x30] sm:$0xff]
    %v910 = vld [vmem:[#allocation2 + $0x38] sm:$0xff]
    %v911 = vld [vmem:[#allocation2 + $0x40] sm:$0xff]
    %v912 = vld [vmem:[#allocation2 + $0x48] sm:$0xff]
    %v913 = vld [vmem:[#allocation2 + $0x50] sm:$0xff]
    %v914 = vld [vmem:[#allocation2 + $0x58] sm:$0xff]
    %v915 = vld [vmem:[#allocation2 + $0x60] sm:$0xff]
    %v916 = vld [vmem:[#allocation2 + $0x68] sm:$0xff]
    %v917 = vld [vmem:[#allocation2 + $0x70] sm:$0xff]
    %v918 = vld [vmem:[#allocation2 + $0x78] sm:$0xff]
    %935 = vrot.lane.b32.xlu0 %v903, 127
    %v936 = vpop.permute.xlu0 %935
    %937 = vrot.lane.b32.xlu0 %v904, 127
    %v938 = vpop.permute.xlu0 %937
    %939 = vrot.lane.b32.xlu0 %v905, 127
    %v940 = vpop.permute.xlu0 %939
    %941 = vrot.lane.b32.xlu0 %v906, 127
    %v942 = vpop.permute.xlu0 %941
    %943 = vrot.lane.b32.xlu0 %v907, 127
    %v944 = vpop.permute.xlu0 %943
    %945 = vrot.lane.b32.xlu0 %v908, 127
    %v946 = vpop.permute.xlu0 %945
    %947 = vrot.lane.b32.xlu0 %v909, 127
    %v948 = vpop.permute.xlu0 %947
    %949 = vrot.lane.b32.xlu0 %v910, 127
    %v950 = vpop.permute.xlu0 %949
    %951 = vrot.lane.b32.xlu0 %v911, 127
    %v952 = vpop.permute.xlu0 %951
    %953 = vrot.lane.b32.xlu0 %v912, 127
    %v954 = vpop.permute.xlu0 %953
    %955 = vrot.lane.b32.xlu0 %v913, 127
    %v956 = vpop.permute.xlu0 %955
    %957 = vrot.lane.b32.xlu0 %v914, 127
    %v958 = vpop.permute.xlu0 %957
    %959 = vrot.lane.b32.xlu0 %v915, 127
    %v960 = vpop.permute.xlu0 %959
    %961 = vrot.lane.b32.xlu0 %v916, 127
    %v962 = vpop.permute.xlu0 %961
    %963 = vrot.lane.b32.xlu0 %v917, 127
    %v964 = vpop.permute.xlu0 %963
    %965 = vrot.lane.b32.xlu0 %v918, 127
    %v966 = vpop.permute.xlu0 %965
    %983 = vmatpush.msra.mxu0 %v966
    %984 = vmatpush.msra.mxu0 %v964
    %985 = vmatpush.msra.mxu0 %v962
    %986 = vmatpush.msra.mxu0 %v960
    %987 = vmatpush.msra.mxu0 %v958
    %988 = vmatpush.msra.mxu0 %v956
    %989 = vmatpush.msra.mxu0 %v954
    %990 = vmatpush.msra.mxu0 %v952
    %991 = vmatpush.msra.mxu0 %v950
    %992 = vmatpush.msra.mxu0 %v948
    %993 = vmatpush.msra.mxu0 %v946
    %994 = vmatpush.msra.mxu0 %v944
    %995 = vmatpush.msra.mxu0 %v942
    %996 = vmatpush.msra.mxu0 %v940
    %997 = vmatpush.msra.mxu0 %v938
    %998 = vmatpush.msra.mxu0 %v936
    %999 = vmatmul.f32.gmra.mxu0 %v146
    %v1000 = vpop.f32.mrf.mxu0
    %v1001 = vadd.f32 0.0, %v1000
    %1002 = vmatmul.f32.gmra.mxu0 %v147
    %v1003 = vpop.f32.mrf.mxu0
    %v1004 = vadd.f32 0.0, %v1003
    %1005 = vmatmul.f32.gmra.mxu0 %v148
    %v1006 = vpop.f32.mrf.mxu0
    %v1007 = vadd.f32 0.0, %v1006
    %1008 = vmatmul.f32.gmra.mxu0 %v149
    %v1009 = vpop.f32.mrf.mxu0
    %v1010 = vadd.f32 0.0, %v1009
    %1011 = vmatmul.f32.gmra.mxu0 %v150
    %v1012 = vpop.f32.mrf.mxu0
    %v1013 = vadd.f32 0.0, %v1012
    %1014 = vmatmul.f32.gmra.mxu0 %v151
    %v1015 = vpop.f32.mrf.mxu0
    %v1016 = vadd.f32 0.0, %v1015
    %1017 = vmatmul.f32.gmra.mxu0 %v152
    %v1018 = vpop.f32.mrf.mxu0
    %v1019 = vadd.f32 0.0, %v1018
    %1020 = vmatmul.f32.gmra.mxu0 %v153
    %v1021 = vpop.f32.mrf.mxu0
    %v1022 = vadd.f32 0.0, %v1021
    %1023 = vdwg.mxu0
    %1024 = vmatpush.msra.mxu0 %v918
    %1025 = vmatpush.msra.mxu0 %v917
    %1026 = vmatpush.msra.mxu0 %v916
    %1027 = vmatpush.msra.mxu0 %v915
    %1028 = vmatpush.msra.mxu0 %v914
    %1029 = vmatpush.msra.mxu0 %v913
    %1030 = vmatpush.msra.mxu0 %v912
    %1031 = vmatpush.msra.mxu0 %v911
    %1032 = vmatpush.msra.mxu0 %v910
    %1033 = vmatpush.msra.mxu0 %v909
    %1034 = vmatpush.msra.mxu0 %v908
    %1035 = vmatpush.msra.mxu0 %v907
    %1036 = vmatpush.msra.mxu0 %v906
    %1037 = vmatpush.msra.mxu0 %v905
    %1038 = vmatpush.msra.mxu0 %v904
    %1039 = vmatpush.msra.mxu0 %v903
    %1040 = vmatmul.f32.gmra.mxu0 %v137
    %v1041 = vpop.f32.mrf.mxu0
    %v1042 = vadd.f32 %v1001, %v1041
    %1043 = vmatmul.f32.gmra.mxu0 %v138
    %v1044 = vpop.f32.mrf.mxu0
    %v1045 = vadd.f32 %v1004, %v1044
    %1046 = vmatmul.f32.gmra.mxu0 %v139
    %v1047 = vpop.f32.mrf.mxu0
    %v1048 = vadd.f32 %v1007, %v1047
    %1049 = vmatmul.f32.gmra.mxu0 %v140
    %v1050 = vpop.f32.mrf.mxu0
    %v1051 = vadd.f32 %v1010, %v1050
    %1052 = vmatmul.f32.gmra.mxu0 %v141
    %v1053 = vpop.f32.mrf.mxu0
    %v1054 = vadd.f32 %v1013, %v1053
    %1055 = vmatmul.f32.gmra.mxu0 %v142
    %v1056 = vpop.f32.mrf.mxu0
    %v1057 = vadd.f32 %v1016, %v1056
    %1058 = vmatmul.f32.gmra.mxu0 %v143
    %v1059 = vpop.f32.mrf.mxu0
    %v1060 = vadd.f32 %v1019, %v1059
    %1061 = vmatmul.f32.gmra.mxu0 %v144
    %v1062 = vpop.f32.mrf.mxu0
    %v1063 = vadd.f32 %v1022, %v1062
    %1064 = vdwg.mxu0
    %1065 = vrot.lane.b32.xlu0 %v903, 126
    %v1066 = vpop.permute.xlu0 %1065
    %1067 = vrot.lane.b32.xlu0 %v904, 126
    %v1068 = vpop.permute.xlu0 %1067
    %1069 = vrot.lane.b32.xlu0 %v905, 126
    %v1070 = vpop.permute.xlu0 %1069
    %1071 = vrot.lane.b32.xlu0 %v906, 126
    %v1072 = vpop.permute.xlu0 %1071
    %1073 = vrot.lane.b32.xlu0 %v907, 126
    %v1074 = vpop.permute.xlu0 %1073
    %1075 = vrot.lane.b32.xlu0 %v908, 126
    %v1076 = vpop.permute.xlu0 %1075
    %1077 = vrot.lane.b32.xlu0 %v909, 126
    %v1078 = vpop.permute.xlu0 %1077
    %1079 = vrot.lane.b32.xlu0 %v910, 126
    %v1080 = vpop.permute.xlu0 %1079
    %1081 = vrot.lane.b32.xlu0 %v911, 126
    %v1082 = vpop.permute.xlu0 %1081
    %1083 = vrot.lane.b32.xlu0 %v912, 126
    %v1084 = vpop.permute.xlu0 %1083
    %1085 = vrot.lane.b32.xlu0 %v913, 126
    %v1086 = vpop.permute.xlu0 %1085
    %1087 = vrot.lane.b32.xlu0 %v914, 126
    %v1088 = vpop.permute.xlu0 %1087
    %1089 = vrot.lane.b32.xlu0 %v915, 126
    %v1090 = vpop.permute.xlu0 %1089
    %1091 = vrot.lane.b32.xlu0 %v916, 126
    %v1092 = vpop.permute.xlu0 %1091
    %1093 = vrot.lane.b32.xlu0 %v917, 126
    %v1094 = vpop.permute.xlu0 %1093
    %1095 = vrot.lane.b32.xlu0 %v918, 126
    %v1096 = vpop.permute.xlu0 %1095
    %1113 = vmatpush.msra.mxu0 %v1096
    %1114 = vmatpush.msra.mxu0 %v1094
    %1115 = vmatpush.msra.mxu0 %v1092
    %1116 = vmatpush.msra.mxu0 %v1090
    %1117 = vmatpush.msra.mxu0 %v1088
    %1118 = vmatpush.msra.mxu0 %v1086
    %1119 = vmatpush.msra.mxu0 %v1084
    %1120 = vmatpush.msra.mxu0 %v1082
    %1121 = vmatpush.msra.mxu0 %v1080
    %1122 = vmatpush.msra.mxu0 %v1078
    %1123 = vmatpush.msra.mxu0 %v1076
    %1124 = vmatpush.msra.mxu0 %v1074
    %1125 = vmatpush.msra.mxu0 %v1072
    %1126 = vmatpush.msra.mxu0 %v1070
    %1127 = vmatpush.msra.mxu0 %v1068
    %1128 = vmatpush.msra.mxu0 %v1066
    %1129 = vmatmul.f32.gmra.mxu0 %v155
    %v1130 = vpop.f32.mrf.mxu0
    %v1131 = vadd.f32 0.0, %v1130
    %1132 = vmatmul.f32.gmra.mxu0 %v156
    %v1133 = vpop.f32.mrf.mxu0
    %v1134 = vadd.f32 0.0, %v1133
    %1135 = vmatmul.f32.gmra.mxu0 %v157
    %v1136 = vpop.f32.mrf.mxu0
    %v1137 = vadd.f32 0.0, %v1136
    %1138 = vmatmul.f32.gmra.mxu0 %v158
    %v1139 = vpop.f32.mrf.mxu0
    %v1140 = vadd.f32 0.0, %v1139
    %1141 = vmatmul.f32.gmra.mxu0 %v159
    %v1142 = vpop.f32.mrf.mxu0
    %v1143 = vadd.f32 0.0, %v1142
    %1144 = vmatmul.f32.gmra.mxu0 %v160
    %v1145 = vpop.f32.mrf.mxu0
    %v1146 = vadd.f32 0.0, %v1145
    %1147 = vmatmul.f32.gmra.mxu0 %v161
    %v1148 = vpop.f32.mrf.mxu0
    %v1149 = vadd.f32 0.0, %v1148
    %1150 = vmatmul.f32.gmra.mxu0 %v162
    %v1151 = vpop.f32.mrf.mxu0
    %v1152 = vadd.f32 0.0, %v1151
    %1153 = vdwg.mxu0
    %v1154 = vadd.f32 %v1042, %v1131
    %v1155 = vadd.f32 %v1045, %v1134
    %v1156 = vadd.f32 %v1048, %v1137
    %v1157 = vadd.f32 %v1051, %v1140
    %v1158 = vadd.f32 %v1054, %v1143
    %v1159 = vadd.f32 %v1057, %v1146
    %v1160 = vadd.f32 %v1060, %v1149
    %v1161 = vadd.f32 %v1063, %v1152
    %1162 = vrot.lane.b32.xlu0 %v903, 125
    %v1163 = vpop.permute.xlu0 %1162
    %1164 = vrot.lane.b32.xlu0 %v904, 125
    %v1165 = vpop.permute.xlu0 %1164
    %1166 = vrot.lane.b32.xlu0 %v905, 125
    %v1167 = vpop.permute.xlu0 %1166
    %1168 = vrot.lane.b32.xlu0 %v906, 125
    %v1169 = vpop.permute.xlu0 %1168
    %1170 = vrot.lane.b32.xlu0 %v907, 125
    %v1171 = vpop.permute.xlu0 %1170
    %1172 = vrot.lane.b32.xlu0 %v908, 125
    %v1173 = vpop.permute.xlu0 %1172
    %1174 = vrot.lane.b32.xlu0 %v909, 125
    %v1175 = vpop.permute.xlu0 %1174
    %1176 = vrot.lane.b32.xlu0 %v910, 125
    %v1177 = vpop.permute.xlu0 %1176
    %1178 = vrot.lane.b32.xlu0 %v911, 125
    %v1179 = vpop.permute.xlu0 %1178
    %1180 = vrot.lane.b32.xlu0 %v912, 125
    %v1181 = vpop.permute.xlu0 %1180
    %1182 = vrot.lane.b32.xlu0 %v913, 125
    %v1183 = vpop.permute.xlu0 %1182
    %1184 = vrot.lane.b32.xlu0 %v914, 125
    %v1185 = vpop.permute.xlu0 %1184
    %1186 = vrot.lane.b32.xlu0 %v915, 125
    %v1187 = vpop.permute.xlu0 %1186
    %1188 = vrot.lane.b32.xlu0 %v916, 125
    %v1189 = vpop.permute.xlu0 %1188
    %1190 = vrot.lane.b32.xlu0 %v917, 125
    %v1191 = vpop.permute.xlu0 %1190
    %1192 = vrot.lane.b32.xlu0 %v918, 125
    %v1193 = vpop.permute.xlu0 %1192
    %1210 = vmatpush.msra.mxu0 %v1193
    %1211 = vmatpush.msra.mxu0 %v1191
    %1212 = vmatpush.msra.mxu0 %v1189
    %1213 = vmatpush.msra.mxu0 %v1187
    %1214 = vmatpush.msra.mxu0 %v1185
    %1215 = vmatpush.msra.mxu0 %v1183
    %1216 = vmatpush.msra.mxu0 %v1181
    %1217 = vmatpush.msra.mxu0 %v1179
    %1218 = vmatpush.msra.mxu0 %v1177
    %1219 = vmatpush.msra.mxu0 %v1175
    %1220 = vmatpush.msra.mxu0 %v1173
    %1221 = vmatpush.msra.mxu0 %v1171
    %1222 = vmatpush.msra.mxu0 %v1169
    %1223 = vmatpush.msra.mxu0 %v1167
    %1224 = vmatpush.msra.mxu0 %v1165
    %1225 = vmatpush.msra.mxu0 %v1163
    %1226 = vmatmul.f32.gmra.mxu0 %v164
    %v1227 = vpop.f32.mrf.mxu0
    %v1228 = vadd.f32 0.0, %v1227
    %1229 = vmatmul.f32.gmra.mxu0 %v165
    %v1230 = vpop.f32.mrf.mxu0
    %v1231 = vadd.f32 0.0, %v1230
    %1232 = vmatmul.f32.gmra.mxu0 %v166
    %v1233 = vpop.f32.mrf.mxu0
    %v1234 = vadd.f32 0.0, %v1233
    %1235 = vmatmul.f32.gmra.mxu0 %v167
    %v1236 = vpop.f32.mrf.mxu0
    %v1237 = vadd.f32 0.0, %v1236
    %1238 = vmatmul.f32.gmra.mxu0 %v168
    %v1239 = vpop.f32.mrf.mxu0
    %v1240 = vadd.f32 0.0, %v1239
    %1241 = vmatmul.f32.gmra.mxu0 %v169
    %v1242 = vpop.f32.mrf.mxu0
    %v1243 = vadd.f32 0.0, %v1242
    %1244 = vmatmul.f32.gmra.mxu0 %v170
    %v1245 = vpop.f32.mrf.mxu0
    %v1246 = vadd.f32 0.0, %v1245
    %1247 = vmatmul.f32.gmra.mxu0 %v171
    %v1248 = vpop.f32.mrf.mxu0
    %v1249 = vadd.f32 0.0, %v1248
    %1250 = vdwg.mxu0
    %v1251 = vadd.f32 %v1154, %v1228
    %v1252 = vadd.f32 %v1155, %v1231
    %v1253 = vadd.f32 %v1156, %v1234
    %v1254 = vadd.f32 %v1157, %v1237
    %v1255 = vadd.f32 %v1158, %v1240
    %v1256 = vadd.f32 %v1159, %v1243
    %v1257 = vadd.f32 %v1160, %v1246
    %v1258 = vadd.f32 %v1161, %v1249
    %1259 = vrot.lane.b32.xlu0 %v903, 124
    %v1260 = vpop.permute.xlu0 %1259
    %1261 = vrot.lane.b32.xlu0 %v904, 124
    %v1262 = vpop.permute.xlu0 %1261
    %1263 = vrot.lane.b32.xlu0 %v905, 124
    %v1264 = vpop.permute.xlu0 %1263
    %1265 = vrot.lane.b32.xlu0 %v906, 124
    %v1266 = vpop.permute.xlu0 %1265
    %1267 = vrot.lane.b32.xlu0 %v907, 124
    %v1268 = vpop.permute.xlu0 %1267
    %1269 = vrot.lane.b32.xlu0 %v908, 124
    %v1270 = vpop.permute.xlu0 %1269
    %1271 = vrot.lane.b32.xlu0 %v909, 124
    %v1272 = vpop.permute.xlu0 %1271
    %1273 = vrot.lane.b32.xlu0 %v910, 124
    %v1274 = vpop.permute.xlu0 %1273
    %1275 = vrot.lane.b32.xlu0 %v911, 124
    %v1276 = vpop.permute.xlu0 %1275
    %1277 = vrot.lane.b32.xlu0 %v912, 124
    %v1278 = vpop.permute.xlu0 %1277
    %1279 = vrot.lane.b32.xlu0 %v913, 124
    %v1280 = vpop.permute.xlu0 %1279
    %1281 = vrot.lane.b32.xlu0 %v914, 124
    %v1282 = vpop.permute.xlu0 %1281
    %1283 = vrot.lane.b32.xlu0 %v915, 124
    %v1284 = vpop.permute.xlu0 %1283
    %1285 = vrot.lane.b32.xlu0 %v916, 124
    %v1286 = vpop.permute.xlu0 %1285
    %1287 = vrot.lane.b32.xlu0 %v917, 124
    %v1288 = vpop.permute.xlu0 %1287
    %1289 = vrot.lane.b32.xlu0 %v918, 124
    %v1290 = vpop.permute.xlu0 %1289
    %1307 = vmatpush.msra.mxu0 %v1290
    %1308 = vmatpush.msra.mxu0 %v1288
    %1309 = vmatpush.msra.mxu0 %v1286
    %1310 = vmatpush.msra.mxu0 %v1284
    %1311 = vmatpush.msra.mxu0 %v1282
    %1312 = vmatpush.msra.mxu0 %v1280
    %1313 = vmatpush.msra.mxu0 %v1278
    %1314 = vmatpush.msra.mxu0 %v1276
    %1315 = vmatpush.msra.mxu0 %v1274
    %1316 = vmatpush.msra.mxu0 %v1272
    %1317 = vmatpush.msra.mxu0 %v1270
    %1318 = vmatpush.msra.mxu0 %v1268
    %1319 = vmatpush.msra.mxu0 %v1266
    %1320 = vmatpush.msra.mxu0 %v1264
    %1321 = vmatpush.msra.mxu0 %v1262
    %1322 = vmatpush.msra.mxu0 %v1260
    %1323 = vmatmul.f32.gmra.mxu0 %v173
    %v1324 = vpop.f32.mrf.mxu0
    %v1325 = vadd.f32 0.0, %v1324
    %1326 = vmatmul.f32.gmra.mxu0 %v174
    %v1327 = vpop.f32.mrf.mxu0
    %v1328 = vadd.f32 0.0, %v1327
    %1329 = vmatmul.f32.gmra.mxu0 %v175
    %v1330 = vpop.f32.mrf.mxu0
    %v1331 = vadd.f32 0.0, %v1330
    %1332 = vmatmul.f32.gmra.mxu0 %v176
    %v1333 = vpop.f32.mrf.mxu0
    %v1334 = vadd.f32 0.0, %v1333
    %1335 = vmatmul.f32.gmra.mxu0 %v177
    %v1336 = vpop.f32.mrf.mxu0
    %v1337 = vadd.f32 0.0, %v1336
    %1338 = vmatmul.f32.gmra.mxu0 %v178
    %v1339 = vpop.f32.mrf.mxu0
    %v1340 = vadd.f32 0.0, %v1339
    %1341 = vmatmul.f32.gmra.mxu0 %v179
    %v1342 = vpop.f32.mrf.mxu0
    %v1343 = vadd.f32 0.0, %v1342
    %1344 = vmatmul.f32.gmra.mxu0 %v180
    %v1345 = vpop.f32.mrf.mxu0
    %v1346 = vadd.f32 0.0, %v1345
    %1347 = vdwg.mxu0
    %v1348 = vadd.f32 %v1251, %v1325
    %v1349 = vadd.f32 %v1252, %v1328
    %v1350 = vadd.f32 %v1253, %v1331
    %v1351 = vadd.f32 %v1254, %v1334
    %v1352 = vadd.f32 %v1255, %v1337
    %v1353 = vadd.f32 %v1256, %v1340
    %v1354 = vadd.f32 %v1257, %v1343
    %v1355 = vadd.f32 %v1258, %v1346
    %1357 = vset.pattern.permute.xlu0 0
    %1358 = vperm.xlu0 %1357, %v181
    %v1359 = vpop.permute.xlu0 %1358
    %1362 = vset.pattern.permute.xlu0 0
    %1363 = vperm.xlu0 %1362, %v182
    %v1364 = vpop.permute.xlu0 %1363
    %1367 = vset.pattern.permute.xlu0 0
    %1368 = vperm.xlu0 %1367, %v183
    %v1369 = vpop.permute.xlu0 %1368
    %1372 = vset.pattern.permute.xlu0 0
    %1373 = vperm.xlu0 %1372, %v184
    %v1374 = vpop.permute.xlu0 %1373
    %1377 = vset.pattern.permute.xlu0 0
    %1378 = vperm.xlu0 %1377, %v185
    %v1379 = vpop.permute.xlu0 %1378
    %1382 = vset.pattern.permute.xlu0 0
    %1383 = vperm.xlu0 %1382, %v186
    %v1384 = vpop.permute.xlu0 %1383
    %1387 = vset.pattern.permute.xlu0 0
    %1388 = vperm.xlu0 %1387, %v187
    %v1389 = vpop.permute.xlu0 %1388
    %1392 = vset.pattern.permute.xlu0 0
    %1393 = vperm.xlu0 %1392, %v188
    %v1394 = vpop.permute.xlu0 %1393
    %v1396 = vadd.f32 %v1348, %v1359
    %v1397 = vadd.f32 %v1349, %v1364
    %v1398 = vadd.f32 %v1350, %v1369
    %v1399 = vadd.f32 %v1351, %v1374
    %v1400 = vadd.f32 %v1352, %v1379
    %v1401 = vadd.f32 %v1353, %v1384
    %v1402 = vadd.f32 %v1354, %v1389
    %v1403 = vadd.f32 %v1355, %v1394
    %vm1404 = vcmp.gt.f32.partialorder %v1396, 0.0
    %vm1405 = vcmp.gt.f32.partialorder %v1397, 0.0
    %vm1406 = vcmp.gt.f32.partialorder %v1398, 0.0
    %vm1407 = vcmp.gt.f32.partialorder %v1399, 0.0
    %vm1408 = vcmp.gt.f32.partialorder %v1400, 0.0
    %vm1409 = vcmp.gt.f32.partialorder %v1401, 0.0
    %vm1410 = vcmp.gt.f32.partialorder %v1402, 0.0
    %vm1411 = vcmp.gt.f32.partialorder %v1403, 0.0
    %v1412 = vstv %s68
    %v1413 = vmul.f32 %v1412, %v1396
    %v1414 = vmul.f32 %v1412, %v1397
    %v1415 = vmul.f32 %v1412, %v1398
    %v1416 = vmul.f32 %v1412, %v1399
    %v1417 = vmul.f32 %v1412, %v1400
    %v1418 = vmul.f32 %v1412, %v1401
    %v1419 = vmul.f32 %v1412, %v1402
    %v1420 = vmul.f32 %v1412, %v1403
    %v1421 = vsel %vm1404, %v1396, %v1413
    %v1422 = vsel %vm1405, %v1397, %v1414
    %v1423 = vsel %vm1406, %v1398, %v1415
    %v1424 = vsel %vm1407, %v1399, %v1416
    %v1425 = vsel %vm1408, %v1400, %v1417
    %v1426 = vsel %vm1409, %v1401, %v1418
    %v1427 = vsel %vm1410, %v1402, %v1419
    %v1428 = vsel %vm1411, %v1403, %v1420
    %v1430 = vperm.slane %v203, 0
    %vm1432 = vcmask 97280
    %v1434 = vsel %vm1432, %v1421, 0
    %v1437 = vsel %vm1432, %v1422, 0
    %v1440 = vsel %vm1432, %v1423, 0
    %v1443 = vsel %vm1432, %v1424, 0
    %v1446 = vsel %vm1432, %v1425, 0
    %v1449 = vsel %vm1432, %v1426, 0
    %v1452 = vsel %vm1432, %v1427, 0
    %v1455 = vsel %vm1432, %v1428, 0
    %vm1457 = vcmask 1043456
    %v1459 = vsel %vm1457, %v190, 0
    %1461 = vmatpush.msra.mxu0 0.0
    %1462 = vmatpush.msra.mxu0 0.0
    %1463 = vmatpush.msra.mxu0 0.0
    %1464 = vmatpush.msra.mxu0 0.0
    %1465 = vmatpush.msra.mxu0 0.0
    %1466 = vmatpush.msra.mxu0 0.0
    %1467 = vmatpush.msra.mxu0 0.0
    %1468 = vmatpush.msra.mxu0 0.0
    %1469 = vmatpush.msra.mxu0 0.0
    %1470 = vmatpush.msra.mxu0 0.0
    %1471 = vmatpush.msra.mxu0 0.0
    %1472 = vmatpush.msra.mxu0 0.0
    %1473 = vmatpush.msra.mxu0 0.0
    %1474 = vmatpush.msra.mxu0 0.0
    %1475 = vmatpush.msra.mxu0 %v1459
    %1476 = vmatpush.msra.mxu0 %v189
    %1477 = vmatmul.f32.gmra.mxu0 %v1434
    %v1478 = vpop.f32.mrf.mxu0
    %v1479 = vadd.f32 %v1430, %v1478
    %1480 = vmatmul.f32.gmra.mxu0 %v1437
    %v1481 = vpop.f32.mrf.mxu0
    %v1482 = vadd.f32 %v1430, %v1481
    %1483 = vmatmul.f32.gmra.mxu0 %v1440
    %v1484 = vpop.f32.mrf.mxu0
    %v1485 = vadd.f32 %v1430, %v1484
    %1486 = vmatmul.f32.gmra.mxu0 %v1443
    %v1487 = vpop.f32.mrf.mxu0
    %v1488 = vadd.f32 %v1430, %v1487
    %1489 = vmatmul.f32.gmra.mxu0 %v1446
    %v1490 = vpop.f32.mrf.mxu0
    %v1491 = vadd.f32 %v1430, %v1490
    %1492 = vmatmul.f32.gmra.mxu0 %v1449
    %v1493 = vpop.f32.mrf.mxu0
    %v1494 = vadd.f32 %v1430, %v1493
    %1495 = vmatmul.f32.gmra.mxu0 %v1452
    %v1496 = vpop.f32.mrf.mxu0
    %v1497 = vadd.f32 %v1430, %v1496
    %1498 = vmatmul.f32.gmra.mxu0 %v1455
    %v1499 = vpop.f32.mrf.mxu0
    %v1500 = vadd.f32 %v1430, %v1499
    %1501 = vdwg.mxu0
    %1502 = vst [vmem:[#allocation3] sm:$0xff] %v1479
    %1503 = vst [vmem:[#allocation3 + $0x8] sm:$0xff] %v1482
    %1504 = vst [vmem:[#allocation3 + $0x10] sm:$0xff] %v1485
    %1505 = vst [vmem:[#allocation3 + $0x18] sm:$0xff] %v1488
    %1506 = vst [vmem:[#allocation3 + $0x20] sm:$0xff] %v1491
    %1507 = vst [vmem:[#allocation3 + $0x28] sm:$0xff] %v1494
    %1508 = vst [vmem:[#allocation3 + $0x30] sm:$0xff] %v1497
    %1509 = vst [vmem:[#allocation3 + $0x38] sm:$0xff] %v1500
    %s1510 = scalar_lea.vmem %s0, 1
    %v1511 = vld [vmem:[%s1510] sm:$0x1]
    %v1513 = vperm.slane %v1511, 0
    %v1515 = vmul.f32 %v229, %v1513
    %v1516 = vmul.f32 %v234, %v1513
    %v1517 = vmul.f32 %v239, %v1513
    %v1518 = vmul.f32 %v244, %v1513
    %v1519 = vmul.f32 %v249, %v1513
    %v1520 = vmul.f32 %v254, %v1513
    %v1521 = vmul.f32 %v259, %v1513
    %v1522 = vmul.f32 %v264, %v1513
    %v1523 = vmul.f32 %v269, %v1513
    %v1524 = vmul.f32 %v274, %v1513
    %v1525 = vmul.f32 %v279, %v1513
    %v1526 = vmul.f32 %v284, %v1513
    %v1527 = vmul.f32 %v289, %v1513
    %v1528 = vmul.f32 %v294, %v1513
    %v1529 = vmul.f32 %v299, %v1513
    %v1530 = vmul.f32 %v304, %v1513
    %v1531 = vmul.f32 %v328, %v1513
    %v1532 = vmul.f32 %v333, %v1513
    %v1533 = vmul.f32 %v338, %v1513
    %v1534 = vmul.f32 %v343, %v1513
    %v1535 = vmul.f32 %v348, %v1513
    %v1536 = vmul.f32 %v353, %v1513
    %v1537 = vmul.f32 %v358, %v1513
    %v1538 = vmul.f32 %v363, %v1513
    %v1539 = vmul.f32 %v368, %v1513
    %v1540 = vmul.f32 %v373, %v1513
    %v1541 = vmul.f32 %v378, %v1513
    %v1542 = vmul.f32 %v383, %v1513
    %v1543 = vmul.f32 %v388, %v1513
    %v1544 = vmul.f32 %v393, %v1513
    %v1545 = vmul.f32 %v398, %v1513
    %v1546 = vmul.f32 %v403, %v1513
    %1563 = vrot.lane.b32.xlu0 %v1531, 127
    %v1564 = vpop.permute.xlu0 %1563
    %1565 = vrot.lane.b32.xlu0 %v1532, 127
    %v1566 = vpop.permute.xlu0 %1565
    %1567 = vrot.lane.b32.xlu0 %v1533, 127
    %v1568 = vpop.permute.xlu0 %1567
    %1569 = vrot.lane.b32.xlu0 %v1534, 127
    %v1570 = vpop.permute.xlu0 %1569
    %1571 = vrot.lane.b32.xlu0 %v1535, 127
    %v1572 = vpop.permute.xlu0 %1571
    %1573 = vrot.lane.b32.xlu0 %v1536, 127
    %v1574 = vpop.permute.xlu0 %1573
    %1575 = vrot.lane.b32.xlu0 %v1537, 127
    %v1576 = vpop.permute.xlu0 %1575
    %1577 = vrot.lane.b32.xlu0 %v1538, 127
    %v1578 = vpop.permute.xlu0 %1577
    %1579 = vrot.lane.b32.xlu0 %v1539, 127
    %v1580 = vpop.permute.xlu0 %1579
    %1581 = vrot.lane.b32.xlu0 %v1540, 127
    %v1582 = vpop.permute.xlu0 %1581
    %1583 = vrot.lane.b32.xlu0 %v1541, 127
    %v1584 = vpop.permute.xlu0 %1583
    %1585 = vrot.lane.b32.xlu0 %v1542, 127
    %v1586 = vpop.permute.xlu0 %1585
    %1587 = vrot.lane.b32.xlu0 %v1543, 127
    %v1588 = vpop.permute.xlu0 %1587
    %1589 = vrot.lane.b32.xlu0 %v1544, 127
    %v1590 = vpop.permute.xlu0 %1589
    %1591 = vrot.lane.b32.xlu0 %v1545, 127
    %v1592 = vpop.permute.xlu0 %1591
    %1593 = vrot.lane.b32.xlu0 %v1546, 127
    %v1594 = vpop.permute.xlu0 %1593
    %v1611 = vadd.f32 %v1515, %v1564
    %v1612 = vadd.f32 %v1516, %v1566
    %v1613 = vadd.f32 %v1517, %v1568
    %v1614 = vadd.f32 %v1518, %v1570
    %v1615 = vadd.f32 %v1519, %v1572
    %v1616 = vadd.f32 %v1520, %v1574
    %v1617 = vadd.f32 %v1521, %v1576
    %v1618 = vadd.f32 %v1522, %v1578
    %v1619 = vadd.f32 %v1523, %v1580
    %v1620 = vadd.f32 %v1524, %v1582
    %v1621 = vadd.f32 %v1525, %v1584
    %v1622 = vadd.f32 %v1526, %v1586
    %v1623 = vadd.f32 %v1527, %v1588
    %v1624 = vadd.f32 %v1528, %v1590
    %v1625 = vadd.f32 %v1529, %v1592
    %v1626 = vadd.f32 %v1530, %v1594
    %v1627 = vmul.f32 %v504, %v1513
    %v1628 = vmul.f32 %v509, %v1513
    %v1629 = vmul.f32 %v514, %v1513
    %v1630 = vmul.f32 %v519, %v1513
    %v1631 = vmul.f32 %v524, %v1513
    %v1632 = vmul.f32 %v529, %v1513
    %v1633 = vmul.f32 %v534, %v1513
    %v1634 = vmul.f32 %v539, %v1513
    %v1635 = vmul.f32 %v544, %v1513
    %v1636 = vmul.f32 %v549, %v1513
    %v1637 = vmul.f32 %v554, %v1513
    %v1638 = vmul.f32 %v559, %v1513
    %v1639 = vmul.f32 %v564, %v1513
    %v1640 = vmul.f32 %v569, %v1513
    %v1641 = vmul.f32 %v574, %v1513
    %v1642 = vmul.f32 %v579, %v1513
    %1659 = vrot.lane.b32.xlu0 %v1627, 126
    %v1660 = vpop.permute.xlu0 %1659
    %1661 = vrot.lane.b32.xlu0 %v1628, 126
    %v1662 = vpop.permute.xlu0 %1661
    %1663 = vrot.lane.b32.xlu0 %v1629, 126
    %v1664 = vpop.permute.xlu0 %1663
    %1665 = vrot.lane.b32.xlu0 %v1630, 126
    %v1666 = vpop.permute.xlu0 %1665
    %1667 = vrot.lane.b32.xlu0 %v1631, 126
    %v1668 = vpop.permute.xlu0 %1667
    %1669 = vrot.lane.b32.xlu0 %v1632, 126
    %v1670 = vpop.permute.xlu0 %1669
    %1671 = vrot.lane.b32.xlu0 %v1633, 126
    %v1672 = vpop.permute.xlu0 %1671
    %1673 = vrot.lane.b32.xlu0 %v1634, 126
    %v1674 = vpop.permute.xlu0 %1673
    %1675 = vrot.lane.b32.xlu0 %v1635, 126
    %v1676 = vpop.permute.xlu0 %1675
    %1677 = vrot.lane.b32.xlu0 %v1636, 126
    %v1678 = vpop.permute.xlu0 %1677
    %1679 = vrot.lane.b32.xlu0 %v1637, 126
    %v1680 = vpop.permute.xlu0 %1679
    %1681 = vrot.lane.b32.xlu0 %v1638, 126
    %v1682 = vpop.permute.xlu0 %1681
    %1683 = vrot.lane.b32.xlu0 %v1639, 126
    %v1684 = vpop.permute.xlu0 %1683
    %1685 = vrot.lane.b32.xlu0 %v1640, 126
    %v1686 = vpop.permute.xlu0 %1685
    %1687 = vrot.lane.b32.xlu0 %v1641, 126
    %v1688 = vpop.permute.xlu0 %1687
    %1689 = vrot.lane.b32.xlu0 %v1642, 126
    %v1690 = vpop.permute.xlu0 %1689
    %v1707 = vadd.f32 %v1611, %v1660
    %v1708 = vadd.f32 %v1612, %v1662
    %v1709 = vadd.f32 %v1613, %v1664
    %v1710 = vadd.f32 %v1614, %v1666
    %v1711 = vadd.f32 %v1615, %v1668
    %v1712 = vadd.f32 %v1616, %v1670
    %v1713 = vadd.f32 %v1617, %v1672
    %v1714 = vadd.f32 %v1618, %v1674
    %v1715 = vadd.f32 %v1619, %v1676
    %v1716 = vadd.f32 %v1620, %v1678
    %v1717 = vadd.f32 %v1621, %v1680
    %v1718 = vadd.f32 %v1622, %v1682
    %v1719 = vadd.f32 %v1623, %v1684
    %v1720 = vadd.f32 %v1624, %v1686
    %v1721 = vadd.f32 %v1625, %v1688
    %v1722 = vadd.f32 %v1626, %v1690
    %v1723 = vadd.f32 %v1707, %v680
    %v1724 = vadd.f32 %v1708, %v685
    %v1725 = vadd.f32 %v1709, %v690
    %v1726 = vadd.f32 %v1710, %v695
    %v1727 = vadd.f32 %v1711, %v700
    %v1728 = vadd.f32 %v1712, %v705
    %v1729 = vadd.f32 %v1713, %v710
    %v1730 = vadd.f32 %v1714, %v715
    %v1731 = vadd.f32 %v1715, %v720
    %v1732 = vadd.f32 %v1716, %v725
    %v1733 = vadd.f32 %v1717, %v730
    %v1734 = vadd.f32 %v1718, %v735
    %v1735 = vadd.f32 %v1719, %v740
    %v1736 = vadd.f32 %v1720, %v745
    %v1737 = vadd.f32 %v1721, %v750
    %v1738 = vadd.f32 %v1722, %v755
    %vm1739 = vcmp.gt.f32.partialorder %v1723, 0.0
    %vm1740 = vcmp.gt.f32.partialorder %v1724, 0.0
    %vm1741 = vcmp.gt.f32.partialorder %v1725, 0.0
    %vm1742 = vcmp.gt.f32.partialorder %v1726, 0.0
    %vm1743 = vcmp.gt.f32.partialorder %v1727, 0.0
    %vm1744 = vcmp.gt.f32.partialorder %v1728, 0.0
    %vm1745 = vcmp.gt.f32.partialorder %v1729, 0.0
    %vm1746 = vcmp.gt.f32.partialorder %v1730, 0.0
    %vm1747 = vcmp.gt.f32.partialorder %v1731, 0.0
    %vm1748 = vcmp.gt.f32.partialorder %v1732, 0.0
    %vm1749 = vcmp.gt.f32.partialorder %v1733, 0.0
    %vm1750 = vcmp.gt.f32.partialorder %v1734, 0.0
    %vm1751 = vcmp.gt.f32.partialorder %v1735, 0.0
    %vm1752 = vcmp.gt.f32.partialorder %v1736, 0.0
    %vm1753 = vcmp.gt.f32.partialorder %v1737, 0.0
    %vm1754 = vcmp.gt.f32.partialorder %v1738, 0.0
    %v1755 = vmul.f32 %v789, %v1723
    %v1756 = vmul.f32 %v789, %v1724
    %v1757 = vmul.f32 %v789, %v1725
    %v1758 = vmul.f32 %v789, %v1726
    %v1759 = vmul.f32 %v789, %v1727
    %v1760 = vmul.f32 %v789, %v1728
    %v1761 = vmul.f32 %v789, %v1729
    %v1762 = vmul.f32 %v789, %v1730
    %v1763 = vmul.f32 %v789, %v1731
    %v1764 = vmul.f32 %v789, %v1732
    %v1765 = vmul.f32 %v789, %v1733
    %v1766 = vmul.f32 %v789, %v1734
    %v1767 = vmul.f32 %v789, %v1735
    %v1768 = vmul.f32 %v789, %v1736
    %v1769 = vmul.f32 %v789, %v1737
    %v1770 = vmul.f32 %v789, %v1738
    %v1771 = vsel %vm1739, %v1723, %v1755
    %v1772 = vsel %vm1740, %v1724, %v1756
    %v1773 = vsel %vm1741, %v1725, %v1757
    %v1774 = vsel %vm1742, %v1726, %v1758
    %v1775 = vsel %vm1743, %v1727, %v1759
    %v1776 = vsel %vm1744, %v1728, %v1760
    %v1777 = vsel %vm1745, %v1729, %v1761
    %v1778 = vsel %vm1746, %v1730, %v1762
    %v1779 = vsel %vm1747, %v1731, %v1763
    %v1780 = vsel %vm1748, %v1732, %v1764
    %v1781 = vsel %vm1749, %v1733, %v1765
    %v1782 = vsel %vm1750, %v1734, %v1766
    %v1783 = vsel %vm1751, %v1735, %v1767
    %v1784 = vsel %vm1752, %v1736, %v1768
    %v1785 = vsel %vm1753, %v1737, %v1769
    %v1786 = vsel %vm1754, %v1738, %v1770
    %1803 = vrot.lane.b32.xlu0 %v1771, 1
    %v1804 = vpop.permute.xlu0 %1803
    %1805 = vrot.lane.b32.xlu0 %v1772, 1
    %v1806 = vpop.permute.xlu0 %1805
    %1807 = vrot.lane.b32.xlu0 %v1773, 1
    %v1808 = vpop.permute.xlu0 %1807
    %1809 = vrot.lane.b32.xlu0 %v1774, 1
    %v1810 = vpop.permute.xlu0 %1809
    %1811 = vrot.lane.b32.xlu0 %v1775, 1
    %v1812 = vpop.permute.xlu0 %1811
    %1813 = vrot.lane.b32.xlu0 %v1776, 1
    %v1814 = vpop.permute.xlu0 %1813
    %1815 = vrot.lane.b32.xlu0 %v1777, 1
    %v1816 = vpop.permute.xlu0 %1815
    %1817 = vrot.lane.b32.xlu0 %v1778, 1
    %v1818 = vpop.permute.xlu0 %1817
    %1819 = vrot.lane.b32.xlu0 %v1779, 1
    %v1820 = vpop.permute.xlu0 %1819
    %1821 = vrot.lane.b32.xlu0 %v1780, 1
    %v1822 = vpop.permute.xlu0 %1821
    %1823 = vrot.lane.b32.xlu0 %v1781, 1
    %v1824 = vpop.permute.xlu0 %1823
    %1825 = vrot.lane.b32.xlu0 %v1782, 1
    %v1826 = vpop.permute.xlu0 %1825
    %1827 = vrot.lane.b32.xlu0 %v1783, 1
    %v1828 = vpop.permute.xlu0 %1827
    %1829 = vrot.lane.b32.xlu0 %v1784, 1
    %v1830 = vpop.permute.xlu0 %1829
    %1831 = vrot.lane.b32.xlu0 %v1785, 1
    %v1832 = vpop.permute.xlu0 %1831
    %1833 = vrot.lane.b32.xlu0 %v1786, 1
    %v1834 = vpop.permute.xlu0 %1833
    %1851 = vst.msk [vmem:[#allocation2] sm:$0xff] %vm886, %v1804
    %1852 = vst.msk [vmem:[#allocation2 + $0x8] sm:$0xff] %vm886, %v1806
    %1853 = vst.msk [vmem:[#allocation2 + $0x10] sm:$0xff] %vm886, %v1808
    %1854 = vst.msk [vmem:[#allocation2 + $0x18] sm:$0xff] %vm886, %v1810
    %1855 = vst.msk [vmem:[#allocation2 + $0x20] sm:$0xff] %vm886, %v1812
    %1856 = vst.msk [vmem:[#allocation2 + $0x28] sm:$0xff] %vm886, %v1814
    %1857 = vst.msk [vmem:[#allocation2 + $0x30] sm:$0xff] %vm886, %v1816
    %1858 = vst.msk [vmem:[#allocation2 + $0x38] sm:$0xff] %vm886, %v1818
    %1859 = vst.msk [vmem:[#allocation2 + $0x40] sm:$0xff] %vm886, %v1820
    %1860 = vst.msk [vmem:[#allocation2 + $0x48] sm:$0xff] %vm886, %v1822
    %1861 = vst.msk [vmem:[#allocation2 + $0x50] sm:$0xff] %vm886, %v1824
    %1862 = vst.msk [vmem:[#allocation2 + $0x58] sm:$0xff] %vm886, %v1826
    %1863 = vst.msk [vmem:[#allocation2 + $0x60] sm:$0xff] %vm886, %v1828
    %1864 = vst.msk [vmem:[#allocation2 + $0x68] sm:$0xff] %vm886, %v1830
    %1865 = vst.msk [vmem:[#allocation2 + $0x70] sm:$0xff] %vm886, %v1832
    %1866 = vst.msk [vmem:[#allocation2 + $0x78] sm:$0xff] %vm886, %v1834
    %v1867 = vld [vmem:[#allocation2] sm:$0xff]
    %v1868 = vld [vmem:[#allocation2 + $0x8] sm:$0xff]
    %v1869 = vld [vmem:[#allocation2 + $0x10] sm:$0xff]
    %v1870 = vld [vmem:[#allocation2 + $0x18] sm:$0xff]
    %v1871 = vld [vmem:[#allocation2 + $0x20] sm:$0xff]
    %v1872 = vld [vmem:[#allocation2 + $0x28] sm:$0xff]
    %v1873 = vld [vmem:[#allocation2 + $0x30] sm:$0xff]
    %v1874 = vld [vmem:[#allocation2 + $0x38] sm:$0xff]
    %v1875 = vld [vmem:[#allocation2 + $0x40] sm:$0xff]
    %v1876 = vld [vmem:[#allocation2 + $0x48] sm:$0xff]
    %v1877 = vld [vmem:[#allocation2 + $0x50] sm:$0xff]
    %v1878 = vld [vmem:[#allocation2 + $0x58] sm:$0xff]
    %v1879 = vld [vmem:[#allocation2 + $0x60] sm:$0xff]
    %v1880 = vld [vmem:[#allocation2 + $0x68] sm:$0xff]
    %v1881 = vld [vmem:[#allocation2 + $0x70] sm:$0xff]
    %v1882 = vld [vmem:[#allocation2 + $0x78] sm:$0xff]
    %1899 = vrot.lane.b32.xlu0 %v1867, 127
    %v1900 = vpop.permute.xlu0 %1899
    %1901 = vrot.lane.b32.xlu0 %v1868, 127
    %v1902 = vpop.permute.xlu0 %1901
    %1903 = vrot.lane.b32.xlu0 %v1869, 127
    %v1904 = vpop.permute.xlu0 %1903
    %1905 = vrot.lane.b32.xlu0 %v1870, 127
    %v1906 = vpop.permute.xlu0 %1905
    %1907 = vrot.lane.b32.xlu0 %v1871, 127
    %v1908 = vpop.permute.xlu0 %1907
    %1909 = vrot.lane.b32.xlu0 %v1872, 127
    %v1910 = vpop.permute.xlu0 %1909
    %1911 = vrot.lane.b32.xlu0 %v1873, 127
    %v1912 = vpop.permute.xlu0 %1911
    %1913 = vrot.lane.b32.xlu0 %v1874, 127
    %v1914 = vpop.permute.xlu0 %1913
    %1915 = vrot.lane.b32.xlu0 %v1875, 127
    %v1916 = vpop.permute.xlu0 %1915
    %1917 = vrot.lane.b32.xlu0 %v1876, 127
    %v1918 = vpop.permute.xlu0 %1917
    %1919 = vrot.lane.b32.xlu0 %v1877, 127
    %v1920 = vpop.permute.xlu0 %1919
    %1921 = vrot.lane.b32.xlu0 %v1878, 127
    %v1922 = vpop.permute.xlu0 %1921
    %1923 = vrot.lane.b32.xlu0 %v1879, 127
    %v1924 = vpop.permute.xlu0 %1923
    %1925 = vrot.lane.b32.xlu0 %v1880, 127
    %v1926 = vpop.permute.xlu0 %1925
    %1927 = vrot.lane.b32.xlu0 %v1881, 127
    %v1928 = vpop.permute.xlu0 %1927
    %1929 = vrot.lane.b32.xlu0 %v1882, 127
    %v1930 = vpop.permute.xlu0 %1929
    %1947 = vmatpush.msra.mxu0 %v1930
    %1948 = vmatpush.msra.mxu0 %v1928
    %1949 = vmatpush.msra.mxu0 %v1926
    %1950 = vmatpush.msra.mxu0 %v1924
    %1951 = vmatpush.msra.mxu0 %v1922
    %1952 = vmatpush.msra.mxu0 %v1920
    %1953 = vmatpush.msra.mxu0 %v1918
    %1954 = vmatpush.msra.mxu0 %v1916
    %1955 = vmatpush.msra.mxu0 %v1914
    %1956 = vmatpush.msra.mxu0 %v1912
    %1957 = vmatpush.msra.mxu0 %v1910
    %1958 = vmatpush.msra.mxu0 %v1908
    %1959 = vmatpush.msra.mxu0 %v1906
    %1960 = vmatpush.msra.mxu0 %v1904
    %1961 = vmatpush.msra.mxu0 %v1902
    %1962 = vmatpush.msra.mxu0 %v1900
    %1963 = vmatmul.f32.gmra.mxu0 %v146
    %v1964 = vpop.f32.mrf.mxu0
    %v1965 = vadd.f32 0.0, %v1964
    %1966 = vmatmul.f32.gmra.mxu0 %v147
    %v1967 = vpop.f32.mrf.mxu0
    %v1968 = vadd.f32 0.0, %v1967
    %1969 = vmatmul.f32.gmra.mxu0 %v148
    %v1970 = vpop.f32.mrf.mxu0
    %v1971 = vadd.f32 0.0, %v1970
    %1972 = vmatmul.f32.gmra.mxu0 %v149
    %v1973 = vpop.f32.mrf.mxu0
    %v1974 = vadd.f32 0.0, %v1973
    %1975 = vmatmul.f32.gmra.mxu0 %v150
    %v1976 = vpop.f32.mrf.mxu0
    %v1977 = vadd.f32 0.0, %v1976
    %1978 = vmatmul.f32.gmra.mxu0 %v151
    %v1979 = vpop.f32.mrf.mxu0
    %v1980 = vadd.f32 0.0, %v1979
    %1981 = vmatmul.f32.gmra.mxu0 %v152
    %v1982 = vpop.f32.mrf.mxu0
    %v1983 = vadd.f32 0.0, %v1982
    %1984 = vmatmul.f32.gmra.mxu0 %v153
    %v1985 = vpop.f32.mrf.mxu0
    %v1986 = vadd.f32 0.0, %v1985
    %1987 = vdwg.mxu0
    %1988 = vmatpush.msra.mxu0 %v1882
    %1989 = vmatpush.msra.mxu0 %v1881
    %1990 = vmatpush.msra.mxu0 %v1880
    %1991 = vmatpush.msra.mxu0 %v1879
    %1992 = vmatpush.msra.mxu0 %v1878
    %1993 = vmatpush.msra.mxu0 %v1877
    %1994 = vmatpush.msra.mxu0 %v1876
    %1995 = vmatpush.msra.mxu0 %v1875
    %1996 = vmatpush.msra.mxu0 %v1874
    %1997 = vmatpush.msra.mxu0 %v1873
    %1998 = vmatpush.msra.mxu0 %v1872
    %1999 = vmatpush.msra.mxu0 %v1871
    %2000 = vmatpush.msra.mxu0 %v1870
    %2001 = vmatpush.msra.mxu0 %v1869
    %2002 = vmatpush.msra.mxu0 %v1868
    %2003 = vmatpush.msra.mxu0 %v1867
    %2004 = vmatmul.f32.gmra.mxu0 %v137
    %v2005 = vpop.f32.mrf.mxu0
    %v2006 = vadd.f32 %v1965, %v2005
    %2007 = vmatmul.f32.gmra.mxu0 %v138
    %v2008 = vpop.f32.mrf.mxu0
    %v2009 = vadd.f32 %v1968, %v2008
    %2010 = vmatmul.f32.gmra.mxu0 %v139
    %v2011 = vpop.f32.mrf.mxu0
    %v2012 = vadd.f32 %v1971, %v2011
    %2013 = vmatmul.f32.gmra.mxu0 %v140
    %v2014 = vpop.f32.mrf.mxu0
    %v2015 = vadd.f32 %v1974, %v2014
    %2016 = vmatmul.f32.gmra.mxu0 %v141
    %v2017 = vpop.f32.mrf.mxu0
    %v2018 = vadd.f32 %v1977, %v2017
    %2019 = vmatmul.f32.gmra.mxu0 %v142
    %v2020 = vpop.f32.mrf.mxu0
    %v2021 = vadd.f32 %v1980, %v2020
    %2022 = vmatmul.f32.gmra.mxu0 %v143
    %v2023 = vpop.f32.mrf.mxu0
    %v2024 = vadd.f32 %v1983, %v2023
    %2025 = vmatmul.f32.gmra.mxu0 %v144
    %v2026 = vpop.f32.mrf.mxu0
    %v2027 = vadd.f32 %v1986, %v2026
    %2028 = vdwg.mxu0
    %2029 = vrot.lane.b32.xlu0 %v1867, 126
    %v2030 = vpop.permute.xlu0 %2029
    %2031 = vrot.lane.b32.xlu0 %v1868, 126
    %v2032 = vpop.permute.xlu0 %2031
    %2033 = vrot.lane.b32.xlu0 %v1869, 126
    %v2034 = vpop.permute.xlu0 %2033
    %2035 = vrot.lane.b32.xlu0 %v1870, 126
    %v2036 = vpop.permute.xlu0 %2035
    %2037 = vrot.lane.b32.xlu0 %v1871, 126
    %v2038 = vpop.permute.xlu0 %2037
    %2039 = vrot.lane.b32.xlu0 %v1872, 126
    %v2040 = vpop.permute.xlu0 %2039
    %2041 = vrot.lane.b32.xlu0 %v1873, 126
    %v2042 = vpop.permute.xlu0 %2041
    %2043 = vrot.lane.b32.xlu0 %v1874, 126
    %v2044 = vpop.permute.xlu0 %2043
    %2045 = vrot.lane.b32.xlu0 %v1875, 126
    %v2046 = vpop.permute.xlu0 %2045
    %2047 = vrot.lane.b32.xlu0 %v1876, 126
    %v2048 = vpop.permute.xlu0 %2047
    %2049 = vrot.lane.b32.xlu0 %v1877, 126
    %v2050 = vpop.permute.xlu0 %2049
    %2051 = vrot.lane.b32.xlu0 %v1878, 126
    %v2052 = vpop.permute.xlu0 %2051
    %2053 = vrot.lane.b32.xlu0 %v1879, 126
    %v2054 = vpop.permute.xlu0 %2053
    %2055 = vrot.lane.b32.xlu0 %v1880, 126
    %v2056 = vpop.permute.xlu0 %2055
    %2057 = vrot.lane.b32.xlu0 %v1881, 126
    %v2058 = vpop.permute.xlu0 %2057
    %2059 = vrot.lane.b32.xlu0 %v1882, 126
    %v2060 = vpop.permute.xlu0 %2059
    %2077 = vmatpush.msra.mxu0 %v2060
    %2078 = vmatpush.msra.mxu0 %v2058
    %2079 = vmatpush.msra.mxu0 %v2056
    %2080 = vmatpush.msra.mxu0 %v2054
    %2081 = vmatpush.msra.mxu0 %v2052
    %2082 = vmatpush.msra.mxu0 %v2050
    %2083 = vmatpush.msra.mxu0 %v2048
    %2084 = vmatpush.msra.mxu0 %v2046
    %2085 = vmatpush.msra.mxu0 %v2044
    %2086 = vmatpush.msra.mxu0 %v2042
    %2087 = vmatpush.msra.mxu0 %v2040
    %2088 = vmatpush.msra.mxu0 %v2038
    %2089 = vmatpush.msra.mxu0 %v2036
    %2090 = vmatpush.msra.mxu0 %v2034
    %2091 = vmatpush.msra.mxu0 %v2032
    %2092 = vmatpush.msra.mxu0 %v2030
    %2093 = vmatmul.f32.gmra.mxu0 %v155
    %v2094 = vpop.f32.mrf.mxu0
    %v2095 = vadd.f32 0.0, %v2094
    %2096 = vmatmul.f32.gmra.mxu0 %v156
    %v2097 = vpop.f32.mrf.mxu0
    %v2098 = vadd.f32 0.0, %v2097
    %2099 = vmatmul.f32.gmra.mxu0 %v157
    %v2100 = vpop.f32.mrf.mxu0
    %v2101 = vadd.f32 0.0, %v2100
    %2102 = vmatmul.f32.gmra.mxu0 %v158
    %v2103 = vpop.f32.mrf.mxu0
    %v2104 = vadd.f32 0.0, %v2103
    %2105 = vmatmul.f32.gmra.mxu0 %v159
    %v2106 = vpop.f32.mrf.mxu0
    %v2107 = vadd.f32 0.0, %v2106
    %2108 = vmatmul.f32.gmra.mxu0 %v160
    %v2109 = vpop.f32.mrf.mxu0
    %v2110 = vadd.f32 0.0, %v2109
    %2111 = vmatmul.f32.gmra.mxu0 %v161
    %v2112 = vpop.f32.mrf.mxu0
    %v2113 = vadd.f32 0.0, %v2112
    %2114 = vmatmul.f32.gmra.mxu0 %v162
    %v2115 = vpop.f32.mrf.mxu0
    %v2116 = vadd.f32 0.0, %v2115
    %2117 = vdwg.mxu0
    %v2118 = vadd.f32 %v2006, %v2095
    %v2119 = vadd.f32 %v2009, %v2098
    %v2120 = vadd.f32 %v2012, %v2101
    %v2121 = vadd.f32 %v2015, %v2104
    %v2122 = vadd.f32 %v2018, %v2107
    %v2123 = vadd.f32 %v2021, %v2110
    %v2124 = vadd.f32 %v2024, %v2113
    %v2125 = vadd.f32 %v2027, %v2116
    %2126 = vrot.lane.b32.xlu0 %v1867, 125
    %v2127 = vpop.permute.xlu0 %2126
    %2128 = vrot.lane.b32.xlu0 %v1868, 125
    %v2129 = vpop.permute.xlu0 %2128
    %2130 = vrot.lane.b32.xlu0 %v1869, 125
    %v2131 = vpop.permute.xlu0 %2130
    %2132 = vrot.lane.b32.xlu0 %v1870, 125
    %v2133 = vpop.permute.xlu0 %2132
    %2134 = vrot.lane.b32.xlu0 %v1871, 125
    %v2135 = vpop.permute.xlu0 %2134
    %2136 = vrot.lane.b32.xlu0 %v1872, 125
    %v2137 = vpop.permute.xlu0 %2136
    %2138 = vrot.lane.b32.xlu0 %v1873, 125
    %v2139 = vpop.permute.xlu0 %2138
    %2140 = vrot.lane.b32.xlu0 %v1874, 125
    %v2141 = vpop.permute.xlu0 %2140
    %2142 = vrot.lane.b32.xlu0 %v1875, 125
    %v2143 = vpop.permute.xlu0 %2142
    %2144 = vrot.lane.b32.xlu0 %v1876, 125
    %v2145 = vpop.permute.xlu0 %2144
    %2146 = vrot.lane.b32.xlu0 %v1877, 125
    %v2147 = vpop.permute.xlu0 %2146
    %2148 = vrot.lane.b32.xlu0 %v1878, 125
    %v2149 = vpop.permute.xlu0 %2148
    %2150 = vrot.lane.b32.xlu0 %v1879, 125
    %v2151 = vpop.permute.xlu0 %2150
    %2152 = vrot.lane.b32.xlu0 %v1880, 125
    %v2153 = vpop.permute.xlu0 %2152
    %2154 = vrot.lane.b32.xlu0 %v1881, 125
    %v2155 = vpop.permute.xlu0 %2154
    %2156 = vrot.lane.b32.xlu0 %v1882, 125
    %v2157 = vpop.permute.xlu0 %2156
    %2174 = vmatpush.msra.mxu0 %v2157
    %2175 = vmatpush.msra.mxu0 %v2155
    %2176 = vmatpush.msra.mxu0 %v2153
    %2177 = vmatpush.msra.mxu0 %v2151
    %2178 = vmatpush.msra.mxu0 %v2149
    %2179 = vmatpush.msra.mxu0 %v2147
    %2180 = vmatpush.msra.mxu0 %v2145
    %2181 = vmatpush.msra.mxu0 %v2143
    %2182 = vmatpush.msra.mxu0 %v2141
    %2183 = vmatpush.msra.mxu0 %v2139
    %2184 = vmatpush.msra.mxu0 %v2137
    %2185 = vmatpush.msra.mxu0 %v2135
    %2186 = vmatpush.msra.mxu0 %v2133
    %2187 = vmatpush.msra.mxu0 %v2131
    %2188 = vmatpush.msra.mxu0 %v2129
    %2189 = vmatpush.msra.mxu0 %v2127
    %2190 = vmatmul.f32.gmra.mxu0 %v164
    %v2191 = vpop.f32.mrf.mxu0
    %v2192 = vadd.f32 0.0, %v2191
    %2193 = vmatmul.f32.gmra.mxu0 %v165
    %v2194 = vpop.f32.mrf.mxu0
    %v2195 = vadd.f32 0.0, %v2194
    %2196 = vmatmul.f32.gmra.mxu0 %v166
    %v2197 = vpop.f32.mrf.mxu0
    %v2198 = vadd.f32 0.0, %v2197
    %2199 = vmatmul.f32.gmra.mxu0 %v167
    %v2200 = vpop.f32.mrf.mxu0
    %v2201 = vadd.f32 0.0, %v2200
    %2202 = vmatmul.f32.gmra.mxu0 %v168
    %v2203 = vpop.f32.mrf.mxu0
    %v2204 = vadd.f32 0.0, %v2203
    %2205 = vmatmul.f32.gmra.mxu0 %v169
    %v2206 = vpop.f32.mrf.mxu0
    %v2207 = vadd.f32 0.0, %v2206
    %2208 = vmatmul.f32.gmra.mxu0 %v170
    %v2209 = vpop.f32.mrf.mxu0
    %v2210 = vadd.f32 0.0, %v2209
    %2211 = vmatmul.f32.gmra.mxu0 %v171
    %v2212 = vpop.f32.mrf.mxu0
    %v2213 = vadd.f32 0.0, %v2212
    %2214 = vdwg.mxu0
    %v2215 = vadd.f32 %v2118, %v2192
    %v2216 = vadd.f32 %v2119, %v2195
    %v2217 = vadd.f32 %v2120, %v2198
    %v2218 = vadd.f32 %v2121, %v2201
    %v2219 = vadd.f32 %v2122, %v2204
    %v2220 = vadd.f32 %v2123, %v2207
    %v2221 = vadd.f32 %v2124, %v2210
    %v2222 = vadd.f32 %v2125, %v2213
    %2223 = vrot.lane.b32.xlu0 %v1867, 124
    %v2224 = vpop.permute.xlu0 %2223
    %2225 = vrot.lane.b32.xlu0 %v1868, 124
    %v2226 = vpop.permute.xlu0 %2225
    %2227 = vrot.lane.b32.xlu0 %v1869, 124
    %v2228 = vpop.permute.xlu0 %2227
    %2229 = vrot.lane.b32.xlu0 %v1870, 124
    %v2230 = vpop.permute.xlu0 %2229
    %2231 = vrot.lane.b32.xlu0 %v1871, 124
    %v2232 = vpop.permute.xlu0 %2231
    %2233 = vrot.lane.b32.xlu0 %v1872, 124
    %v2234 = vpop.permute.xlu0 %2233
    %2235 = vrot.lane.b32.xlu0 %v1873, 124
    %v2236 = vpop.permute.xlu0 %2235
    %2237 = vrot.lane.b32.xlu0 %v1874, 124
    %v2238 = vpop.permute.xlu0 %2237
    %2239 = vrot.lane.b32.xlu0 %v1875, 124
    %v2240 = vpop.permute.xlu0 %2239
    %2241 = vrot.lane.b32.xlu0 %v1876, 124
    %v2242 = vpop.permute.xlu0 %2241
    %2243 = vrot.lane.b32.xlu0 %v1877, 124
    %v2244 = vpop.permute.xlu0 %2243
    %2245 = vrot.lane.b32.xlu0 %v1878, 124
    %v2246 = vpop.permute.xlu0 %2245
    %2247 = vrot.lane.b32.xlu0 %v1879, 124
    %v2248 = vpop.permute.xlu0 %2247
    %2249 = vrot.lane.b32.xlu0 %v1880, 124
    %v2250 = vpop.permute.xlu0 %2249
    %2251 = vrot.lane.b32.xlu0 %v1881, 124
    %v2252 = vpop.permute.xlu0 %2251
    %2253 = vrot.lane.b32.xlu0 %v1882, 124
    %v2254 = vpop.permute.xlu0 %2253
    %2271 = vmatpush.msra.mxu0 %v2254
    %2272 = vmatpush.msra.mxu0 %v2252
    %2273 = vmatpush.msra.mxu0 %v2250
    %2274 = vmatpush.msra.mxu0 %v2248
    %2275 = vmatpush.msra.mxu0 %v2246
    %2276 = vmatpush.msra.mxu0 %v2244
    %2277 = vmatpush.msra.mxu0 %v2242
    %2278 = vmatpush.msra.mxu0 %v2240
    %2279 = vmatpush.msra.mxu0 %v2238
    %2280 = vmatpush.msra.mxu0 %v2236
    %2281 = vmatpush.msra.mxu0 %v2234
    %2282 = vmatpush.msra.mxu0 %v2232
    %2283 = vmatpush.msra.mxu0 %v2230
    %2284 = vmatpush.msra.mxu0 %v2228
    %2285 = vmatpush.msra.mxu0 %v2226
    %2286 = vmatpush.msra.mxu0 %v2224
    %2287 = vmatmul.f32.gmra.mxu0 %v173
    %v2288 = vpop.f32.mrf.mxu0
    %v2289 = vadd.f32 0.0, %v2288
    %2290 = vmatmul.f32.gmra.mxu0 %v174
    %v2291 = vpop.f32.mrf.mxu0
    %v2292 = vadd.f32 0.0, %v2291
    %2293 = vmatmul.f32.gmra.mxu0 %v175
    %v2294 = vpop.f32.mrf.mxu0
    %v2295 = vadd.f32 0.0, %v2294
    %2296 = vmatmul.f32.gmra.mxu0 %v176
    %v2297 = vpop.f32.mrf.mxu0
    %v2298 = vadd.f32 0.0, %v2297
    %2299 = vmatmul.f32.gmra.mxu0 %v177
    %v2300 = vpop.f32.mrf.mxu0
    %v2301 = vadd.f32 0.0, %v2300
    %2302 = vmatmul.f32.gmra.mxu0 %v178
    %v2303 = vpop.f32.mrf.mxu0
    %v2304 = vadd.f32 0.0, %v2303
    %2305 = vmatmul.f32.gmra.mxu0 %v179
    %v2306 = vpop.f32.mrf.mxu0
    %v2307 = vadd.f32 0.0, %v2306
    %2308 = vmatmul.f32.gmra.mxu0 %v180
    %v2309 = vpop.f32.mrf.mxu0
    %v2310 = vadd.f32 0.0, %v2309
    %2311 = vdwg.mxu0
    %v2312 = vadd.f32 %v2215, %v2289
    %v2313 = vadd.f32 %v2216, %v2292
    %v2314 = vadd.f32 %v2217, %v2295
    %v2315 = vadd.f32 %v2218, %v2298
    %v2316 = vadd.f32 %v2219, %v2301
    %v2317 = vadd.f32 %v2220, %v2304
    %v2318 = vadd.f32 %v2221, %v2307
    %v2319 = vadd.f32 %v2222, %v2310
    %v2320 = vadd.f32 %v2312, %v1359
    %v2321 = vadd.f32 %v2313, %v1364
    %v2322 = vadd.f32 %v2314, %v1369
    %v2323 = vadd.f32 %v2315, %v1374
    %v2324 = vadd.f32 %v2316, %v1379
    %v2325 = vadd.f32 %v2317, %v1384
    %v2326 = vadd.f32 %v2318, %v1389
    %v2327 = vadd.f32 %v2319, %v1394
    %vm2328 = vcmp.gt.f32.partialorder %v2320, 0.0
    %vm2329 = vcmp.gt.f32.partialorder %v2321, 0.0
    %vm2330 = vcmp.gt.f32.partialorder %v2322, 0.0
    %vm2331 = vcmp.gt.f32.partialorder %v2323, 0.0
    %vm2332 = vcmp.gt.f32.partialorder %v2324, 0.0
    %vm2333 = vcmp.gt.f32.partialorder %v2325, 0.0
    %vm2334 = vcmp.gt.f32.partialorder %v2326, 0.0
    %vm2335 = vcmp.gt.f32.partialorder %v2327, 0.0
    %v2336 = vmul.f32 %v1412, %v2320
    %v2337 = vmul.f32 %v1412, %v2321
    %v2338 = vmul.f32 %v1412, %v2322
    %v2339 = vmul.f32 %v1412, %v2323
    %v2340 = vmul.f32 %v1412, %v2324
    %v2341 = vmul.f32 %v1412, %v2325
    %v2342 = vmul.f32 %v1412, %v2326
    %v2343 = vmul.f32 %v1412, %v2327
    %v2344 = vsel %vm2328, %v2320, %v2336
    %v2345 = vsel %vm2329, %v2321, %v2337
    %v2346 = vsel %vm2330, %v2322, %v2338
    %v2347 = vsel %vm2331, %v2323, %v2339
    %v2348 = vsel %vm2332, %v2324, %v2340
    %v2349 = vsel %vm2333, %v2325, %v2341
    %v2350 = vsel %vm2334, %v2326, %v2342
    %v2351 = vsel %vm2335, %v2327, %v2343
    %v2353 = vsel %vm1432, %v2344, 0
    %v2356 = vsel %vm1432, %v2345, 0
    %v2359 = vsel %vm1432, %v2346, 0
    %v2362 = vsel %vm1432, %v2347, 0
    %v2365 = vsel %vm1432, %v2348, 0
    %v2368 = vsel %vm1432, %v2349, 0
    %v2371 = vsel %vm1432, %v2350, 0
    %v2374 = vsel %vm1432, %v2351, 0
    %2376 = vmatpush.msra.mxu0 0.0
    %2377 = vmatpush.msra.mxu0 0.0
    %2378 = vmatpush.msra.mxu0 0.0
    %2379 = vmatpush.msra.mxu0 0.0
    %2380 = vmatpush.msra.mxu0 0.0
    %2381 = vmatpush.msra.mxu0 0.0
    %2382 = vmatpush.msra.mxu0 0.0
    %2383 = vmatpush.msra.mxu0 0.0
    %2384 = vmatpush.msra.mxu0 0.0
    %2385 = vmatpush.msra.mxu0 0.0
    %2386 = vmatpush.msra.mxu0 0.0
    %2387 = vmatpush.msra.mxu0 0.0
    %2388 = vmatpush.msra.mxu0 0.0
    %2389 = vmatpush.msra.mxu0 0.0
    %2390 = vmatpush.msra.mxu0 %v1459
    %2391 = vmatpush.msra.mxu0 %v189
    %2392 = vmatmul.f32.gmra.mxu0 %v2353
    %v2393 = vpop.f32.mrf.mxu0
    %v2394 = vadd.f32 %v1430, %v2393
    %2395 = vmatmul.f32.gmra.mxu0 %v2356
    %v2396 = vpop.f32.mrf.mxu0
    %v2397 = vadd.f32 %v1430, %v2396
    %2398 = vmatmul.f32.gmra.mxu0 %v2359
    %v2399 = vpop.f32.mrf.mxu0
    %v2400 = vadd.f32 %v1430, %v2399
    %2401 = vmatmul.f32.gmra.mxu0 %v2362
    %v2402 = vpop.f32.mrf.mxu0
    %v2403 = vadd.f32 %v1430, %v2402
    %2404 = vmatmul.f32.gmra.mxu0 %v2365
    %v2405 = vpop.f32.mrf.mxu0
    %v2406 = vadd.f32 %v1430, %v2405
    %2407 = vmatmul.f32.gmra.mxu0 %v2368
    %v2408 = vpop.f32.mrf.mxu0
    %v2409 = vadd.f32 %v1430, %v2408
    %2410 = vmatmul.f32.gmra.mxu0 %v2371
    %v2411 = vpop.f32.mrf.mxu0
    %v2412 = vadd.f32 %v1430, %v2411
    %2413 = vmatmul.f32.gmra.mxu0 %v2374
    %v2414 = vpop.f32.mrf.mxu0
    %v2415 = vadd.f32 %v1430, %v2414
    %2416 = vdwg.mxu0
    %2417 = vst [vmem:[#allocation3 + $0x40] sm:$0xff] %v2394
    %2418 = vst [vmem:[#allocation3 + $0x48] sm:$0xff] %v2397
    %2419 = vst [vmem:[#allocation3 + $0x50] sm:$0xff] %v2400
    %2420 = vst [vmem:[#allocation3 + $0x58] sm:$0xff] %v2403
    %2421 = vst [vmem:[#allocation3 + $0x60] sm:$0xff] %v2406
    %2422 = vst [vmem:[#allocation3 + $0x68] sm:$0xff] %v2409
    %2423 = vst [vmem:[#allocation3 + $0x70] sm:$0xff] %v2412
    %2424 = vst [vmem:[#allocation3 + $0x78] sm:$0xff] %v2415
    loop: start=0, step=1, limit=64
    $region70: #{tpu_custom_call.1} parent=1 // loop_pre_header
      _
    $region71: #{tpu_custom_call.1} parent=1 // loop_header
      %s2426 = sphi 0, %s2430
      %p2427 = scmp.ge.s32.totalorder %s2426, 64
      %v2431 = vphi 0.0, %v2508
      %v2432 = vphi 0.0, %v2596
      %v2433 = vphi 0.0, %v2502
      %v2434 = vphi 0.0, %v2590
    $region72: #{tpu_custom_call.1} parent=1 // loop_header_branch
      %2429 = sbr.rel (%p2427) target = $region76
    $region73: #{tpu_custom_call.1} parent=1 // loop_body
      %s2435 = scalar_lea.vmem [#allocation3], %s2426
      %v2436 = vld [vmem:[%s2435] sm:$0x1]
      %s2437 = sadd.s32 %s2426, 64
      %s2438 = scalar_lea.vmem [#allocation3], %s2437
      %v2439 = vld [vmem:[%s2438] sm:$0x1]
      %v2441 = vrot.slane %v2439, 7
      %vm2443 = vcmask 1040384
      %v2444 = vsel %vm2443, %v2436, %v2441
      %2446 = vrot.lane.b32.xlu0 %v2431, 32
      %v2447 = vpop.permute.xlu0 %2446
      %vm2448 = vcmask 261120
      %v2449 = vsel %vm2448, %v2447, 0
      %2451 = vmatpush.msra.mxu0 0.0
      %2452 = vmatpush.msra.mxu0 0.0
      %2453 = vmatpush.msra.mxu0 0.0
      %2454 = vmatpush.msra.mxu0 0.0
      %2455 = vmatpush.msra.mxu0 0.0
      %2456 = vmatpush.msra.mxu0 0.0
      %2457 = vmatpush.msra.mxu0 0.0
      %2458 = vmatpush.msra.mxu0 0.0
      %2459 = vmatpush.msra.mxu0 0.0
      %2460 = vmatpush.msra.mxu0 0.0
      %2461 = vmatpush.msra.mxu0 0.0
      %2462 = vmatpush.msra.mxu0 0.0
      %2463 = vmatpush.msra.mxu0 %v198
      %2464 = vmatpush.msra.mxu0 %v197
      %2465 = vmatpush.msra.mxu0 %v196
      %2466 = vmatpush.msra.mxu0 %v195
      %2467 = vmatmul.f32.gmra.mxu0 %v2449
      %v2468 = vpop.f32.mrf.mxu0
      %v2469 = vadd.f32 0.0, %v2468
      %2470 = vdwg.mxu0
      %v2471 = vadd.f32 %v2444, %v2469
      %v2472 = vxor.u32 %v2471, 2147483648
      %v2473 = vmul.f32 %v2472, 1.442695
      %v2474 = vpow.pop %v2473
      %v2475 = vadd.f32 %v2474, 1.0
      %v2476 = vrcp.pop %v2475
      %v2477 = vmul.f32 %v2475, %v2476
      %v2478 = vsub.f32 1.0, %v2477
      %v2479 = vmul.f32 %v2476, %v2478
      %v2480 = vadd.f32 %v2476, %v2479
      %vm2481 = vweird.f32 %v2475
      %vm2482 = vweird.f32 %v2476
      %vm2483 = vmor %vm2481, %vm2482
      %v2484 = vsel %vm2483, %v2476, %v2480
      %v2485 = vand.u32 2147483647, %v2475
      %vm2486 = vcmp.eq.f32.partialorder %v2485, 8.507059e+37
      %v2487 = vand.u32 %v2475, 2147483648
      %v2488 = vor.u32 1.1754944e-38, %v2487
      %v2489 = vsel %vm2486, %v2488, %v2484
      %v2490 = vmul.f32 1.0, %v2489
      %v2491 = vtanh.pop %v2471
      %v2492 = vmul.f32 %v2490, %v2433
      %2494 = vrot.lane.b32.xlu0 %v2491, 64
      %v2495 = vpop.permute.xlu0 %2494
      %v2497 = vmul.f32 %v2490, %v2495
      %2499 = vrot.lane.b32.xlu0 %v2497, 32
      %v2500 = vpop.permute.xlu0 %2499
      %v2502 = vadd.f32 %v2492, %v2500
      %v2503 = vtanh.pop %v2502
      %2505 = vrot.lane.b32.xlu0 %v2503, 64
      %v2506 = vpop.permute.xlu0 %2505
      %v2508 = vmul.f32 %v2490, %v2506
      %2510 = vrot.lane.b32.xlu0 %v2432, 32
      %v2511 = vpop.permute.xlu0 %2510
      %v2512 = vsel %vm2448, %v2511, 0
      %2514 = vmatpush.msra.mxu0 0.0
      %2515 = vmatpush.msra.mxu0 0.0
      %2516 = vmatpush.msra.mxu0 0.0
      %2517 = vmatpush.msra.mxu0 0.0
      %2518 = vmatpush.msra.mxu0 0.0
      %2519 = vmatpush.msra.mxu0 0.0
      %2520 = vmatpush.msra.mxu0 0.0
      %2521 = vmatpush.msra.mxu0 0.0
      %2522 = vmatpush.msra.mxu0 0.0
      %2523 = vmatpush.msra.mxu0 0.0
      %2524 = vmatpush.msra.mxu0 0.0
      %2525 = vmatpush.msra.mxu0 0.0
      %2526 = vmatpush.msra.mxu0 %v202
      %2527 = vmatpush.msra.mxu0 %v201
      %2528 = vmatpush.msra.mxu0 %v200
      %2529 = vmatpush.msra.mxu0 %v199
      %2530 = vmatmul.f32.gmra.mxu0 %v2512
      %v2531 = vpop.f32.mrf.mxu0
      %v2532 = vadd.f32 0.0, %v2531
      %2533 = vdwg.mxu0
      %2535 = vrot.lane.b32.xlu0 %v2508, 32
      %v2536 = vpop.permute.xlu0 %2535
      %v2537 = vsel %vm2448, %v2536, 0
      %2539 = vmatpush.msra.mxu0 0.0
      %2540 = vmatpush.msra.mxu0 0.0
      %2541 = vmatpush.msra.mxu0 0.0
      %2542 = vmatpush.msra.mxu0 0.0
      %2543 = vmatpush.msra.mxu0 0.0
      %2544 = vmatpush.msra.mxu0 0.0
      %2545 = vmatpush.msra.mxu0 0.0
      %2546 = vmatpush.msra.mxu0 0.0
      %2547 = vmatpush.msra.mxu0 0.0
      %2548 = vmatpush.msra.mxu0 0.0
      %2549 = vmatpush.msra.mxu0 0.0
      %2550 = vmatpush.msra.mxu0 0.0
      %2551 = vmatpush.msra.mxu0 %v194
      %2552 = vmatpush.msra.mxu0 %v193
      %2553 = vmatpush.msra.mxu0 %v192
      %2554 = vmatpush.msra.mxu0 %v191
      %2555 = vmatmul.f32.gmra.mxu0 %v2537
      %v2556 = vpop.f32.mrf.mxu0
      %v2557 = vadd.f32 %v2532, %v2556
      %2558 = vdwg.mxu0
      %v2559 = vadd.f32 %v2557, %v206
      %v2560 = vxor.u32 %v2559, 2147483648
      %v2561 = vmul.f32 %v2560, 1.442695
      %v2562 = vpow.pop %v2561
      %v2563 = vadd.f32 %v2562, 1.0
      %v2564 = vrcp.pop %v2563
      %v2565 = vmul.f32 %v2563, %v2564
      %v2566 = vsub.f32 1.0, %v2565
      %v2567 = vmul.f32 %v2564, %v2566
      %v2568 = vadd.f32 %v2564, %v2567
      %vm2569 = vweird.f32 %v2563
      %vm2570 = vweird.f32 %v2564
      %vm2571 = vmor %vm2569, %vm2570
      %v2572 = vsel %vm2571, %v2564, %v2568
      %v2573 = vand.u32 2147483647, %v2563
      %vm2574 = vcmp.eq.f32.partialorder %v2573, 8.507059e+37
      %v2575 = vand.u32 %v2563, 2147483648
      %v2576 = vor.u32 1.1754944e-38, %v2575
      %v2577 = vsel %vm2574, %v2576, %v2572
      %v2578 = vmul.f32 1.0, %v2577
      %v2579 = vtanh.pop %v2559
      %v2580 = vmul.f32 %v2578, %v2434
      %2582 = vrot.lane.b32.xlu0 %v2579, 64
      %v2583 = vpop.permute.xlu0 %2582
      %v2585 = vmul.f32 %v2578, %v2583
      %2587 = vrot.lane.b32.xlu0 %v2585, 32
      %v2588 = vpop.permute.xlu0 %2587
      %v2590 = vadd.f32 %v2580, %v2588
      %v2591 = vtanh.pop %v2590
      %2593 = vrot.lane.b32.xlu0 %v2591, 64
      %v2594 = vpop.permute.xlu0 %2593
      %v2596 = vmul.f32 %v2578, %v2594
    $region74: #{tpu_custom_call.1} parent=1 // loop_footer
      %s2430 = sadd.s32 1, %s2426
    $region75: #{tpu_custom_call.1} parent=1 // loop_footer_branch
      %2425 = sbr.rel target = $region71
    $region76: #{tpu_custom_call.1} parent=1 // loop_exit
      _
    %v2597 = vld [vmem:[%s11] sm:$0xff]
    %v2598 = vld [vmem:[%s11 + $0x8] sm:$0xff]
    %v2599 = vld [vmem:[%s11 + $0x10] sm:$0xff]
    %v2600 = vld [vmem:[%s11 + $0x18] sm:$0xff]
    %v2601 = vld [vmem:[%s12] sm:$0x1]
    %v2603 = vperm.slane %v2601, 0
    %2606 = vrot.lane.b32.xlu0 %v2432, 32
    %v2607 = vpop.permute.xlu0 %2606
    %vm2608 = vcmask 261120
    %v2609 = vsel %vm2608, %v2607, 0
    %2611 = vmatpush.msra.mxu0 0.0
    %2612 = vmatpush.msra.mxu0 0.0
    %2613 = vmatpush.msra.mxu0 0.0
    %2614 = vmatpush.msra.mxu0 0.0
    %2615 = vmatpush.msra.mxu0 0.0
    %2616 = vmatpush.msra.mxu0 0.0
    %2617 = vmatpush.msra.mxu0 0.0
    %2618 = vmatpush.msra.mxu0 0.0
    %2619 = vmatpush.msra.mxu0 0.0
    %2620 = vmatpush.msra.mxu0 0.0
    %2621 = vmatpush.msra.mxu0 0.0
    %2622 = vmatpush.msra.mxu0 0.0
    %2623 = vmatpush.msra.mxu0 %v2600
    %2624 = vmatpush.msra.mxu0 %v2599
    %2625 = vmatpush.msra.mxu0 %v2598
    %2626 = vmatpush.msra.mxu0 %v2597
    %2627 = vmatmul.f32.gmra.mxu0 %v2609
    %v2628 = vpop.f32.mrf.mxu0
    %v2629 = vadd.f32 %v2603, %v2628
    %2630 = vdwg.mxu0
    %vm2631 = vcmp.gt.f32.partialorder %v2629, 0.0
    %v2632 = vstv %s69
    %v2633 = vmul.f32 %v2632, %v2629
    %v2634 = vsel %vm2631, %v2629, %v2633
    %v2635 = vld [vmem:[%s13] sm:$0xff]
    %v2636 = vld [vmem:[%s13 + $0x8] sm:$0xff]
    %v2637 = vld [vmem:[%s13 + $0x10] sm:$0xff]
    %v2638 = vld [vmem:[%s13 + $0x18] sm:$0xff]
    %v2639 = vld [vmem:[%s14] sm:$0x1]
    %v2641 = vperm.slane %v2639, 0
    %v2644 = vsel %vm2608, %v2634, 0
    %2646 = vmatpush.msra.mxu0 0.0
    %2647 = vmatpush.msra.mxu0 0.0
    %2648 = vmatpush.msra.mxu0 0.0
    %2649 = vmatpush.msra.mxu0 0.0
    %2650 = vmatpush.msra.mxu0 0.0
    %2651 = vmatpush.msra.mxu0 0.0
    %2652 = vmatpush.msra.mxu0 0.0
    %2653 = vmatpush.msra.mxu0 0.0
    %2654 = vmatpush.msra.mxu0 0.0
    %2655 = vmatpush.msra.mxu0 0.0
    %2656 = vmatpush.msra.mxu0 0.0
    %2657 = vmatpush.msra.mxu0 0.0
    %2658 = vmatpush.msra.mxu0 %v2638
    %2659 = vmatpush.msra.mxu0 %v2637
    %2660 = vmatpush.msra.mxu0 %v2636
    %2661 = vmatpush.msra.mxu0 %v2635
    %2662 = vmatmul.f32.gmra.mxu0 %v2644
    %v2663 = vpop.f32.mrf.mxu0
    %v2664 = vadd.f32 %v2641, %v2663
    %2665 = vdwg.mxu0
    %vm2666 = vcmp.gt.f32.partialorder %v2664, 0.0
    %v2667 = vstv %s70
    %v2668 = vmul.f32 %v2667, %v2664
    %v2669 = vsel %vm2666, %v2664, %v2668
    %vm2670 = vcmask 58368
    %2671 = vst.msk [vmem:[#allocation7] sm:$0x3] %vm2670, %v2669
    // Predicated region
    $region77: #{tpu_custom_call.1} parent=1 // pred_check
      _
    $region78: #{tpu_custom_call.1} parent=1 // pred_check_branch
      %2673 = sbr.rel (0) target = $region80
    $region79: #{tpu_custom_call.1} parent=1 // pred_region
      %2675 = vsyncadd [#allocation5], 0
      %s2677 = sshll.u32 [#allocation7], 4
      %s2678 = int_to_ptr.vmem [resolvable:$true] %s2677
      %s2679 = sshll.u32 %s16, 4
      %s2680 = int_to_ptr.hbm [resolvable:$true] %s2679
      %2682 = dma.vmem_to_hbm [thread:$0]  %s2678, 32, %s2680, [#allocation5]
    $region80: #{tpu_custom_call.1} parent=1 // pred_fallthru
      _
    // Predicated region
    $region81: #{tpu_custom_call.1} parent=1 // pred_check
      _
    $region82: #{tpu_custom_call.1} parent=1 // pred_check_branch
      %2684 = sbr.rel (0) target = $region84
    $region83: #{tpu_custom_call.1} parent=1 // pred_region
      %2686 = dma.done [#allocation5], 32
    $region84: #{tpu_custom_call.1} parent=1 // pred_fallthru
      _
    %2687 = vsyncpa [#allocation5], 1
    %2688 = vsyncpa [#allocation6], 1

</llo_original>
